<compile_context>
chip_gen: v7x
topology: tpu7x:2x2x1
jax: 0.10.0
libtpu: 0.0.40
codegen_flags: <defaults>
</compile_context>

<pallas_src>
import functools

import jax
import jax.numpy as jnp
from jax import lax
from jax.experimental import pallas as pl
from jax.experimental.pallas import tpu as pltpu


def cca_kernel(gamma_ref, wq_ref, bq_ref, wk_ref, bk_ref, wva_ref, bva_ref,
               x_ref, o_ref, *, H, W, TQ):
    """One (batch, query-tile) step.

    x_ref:  (1, C, HW)   lane-dense activations (full pixel axis -> keys).
    o_ref:  (1, C, TQ)   lane-dense output tile (queries q0 .. q0+TQ-1).
    wva/bva: value projection augmented with an all-ones channel (row C) so the
             aggregation matmul also produces the softmax denominator.
    """
    HW = H * W
    C = o_ref.shape[1]

    t = pl.program_id(1)
    q0 = pl.multiple_of(t * TQ, TQ)

    gamma = gamma_ref[0]
    x = x_ref[0]                                   # (C, HW)
    xq = x_ref[0, :, pl.ds(q0, TQ)]                # (C, TQ) query slab / residual

    # Fused 1x1 projections; everything stays (channels, pixels) lane-dense so
    # no XLU transposes are needed anywhere.  f32 inputs, f32 accumulation.
    q = jnp.dot(wq_ref[...], xq, preferred_element_type=jnp.float32) + bq_ref[...]     # (Cr, TQ)
    k = jnp.dot(wk_ref[...], x, preferred_element_type=jnp.float32) + bk_ref[...]      # (Cr, HW)
    v_aug = jnp.dot(wva_ref[...], x, preferred_element_type=jnp.float32) + bva_ref[...]  # (C+1, HW), row C == 1

    # Energy over all HW keys: e[i, j] = sum_c q[c, q0+i] * k[c, j].
    e = lax.dot_general(q, k, (((0,), (0,)), ((), ())),
                        preferred_element_type=jnp.float32)          # (TQ, HW)

    # Criss-cross support generated in-kernel (no (HW,HW) HBM mask): key j is
    # attended iff it shares a row or a column with query q0+i.
    qi = q0 + lax.broadcasted_iota(jnp.int32, (TQ, 1), 0)             # (TQ, 1)
    kj = lax.broadcasted_iota(jnp.int32, (1, HW), 1)                  # (1, HW)
    if (W & (W - 1)) == 0:            # power-of-two W: shift/mask (VPU-safe)
        shift = W.bit_length() - 1
        q_row, q_col = qi >> shift, qi & (W - 1)
        k_row, k_col = kj >> shift, kj & (W - 1)
    else:
        q_row, q_col = qi // W, qi % W
        k_row, k_col = kj // W, kj % W
    allowed = jnp.logical_or(q_row == k_row, q_col == k_col)          # (TQ, HW)

    # Masked, numerically stable softmax numerator (mask + max-sub + exp in one
    # sweep).  Every query row has >= H+W-1 finite entries (keys are never
    # tiled), so the row max is finite and exp(-inf) == 0; the self pixel is
    # counted exactly once — identical to PyTorch's -inf diagonal + concat.
    e = jnp.where(allowed, e, -jnp.inf)
    m = jnp.max(e, axis=1, keepdims=True)
    p = jnp.exp(e - m)                                                # (TQ, HW)

    # Aggregation with UNnormalized weights, contracting the key dim of both
    # operands: result is already (C+1, TQ) lane-dense.  Row C (from the
    # all-ones value channel) is the softmax denominator sum_j exp(e - m).
    out = lax.dot_general(v_aug, p, (((1,), (1,)), ((), ())),
                          preferred_element_type=jnp.float32)         # (C+1, TQ)

    inv = pl.reciprocal(out[C:C + 1, :], approx=True)                 # (1, TQ), EUP
    o_ref[0] = gamma * (out[:C, :] * inv) + xq


def criss_cross_attention(x_nchw, params, *, tq=128):
    """x_nchw: (B, C, H, W) float32.  Returns (B, C, H, W)."""
    Wq, bq, Wk, bk, Wv, bv, gamma = params
    B, C, H, W = x_nchw.shape
    Cr = Wq.shape[0]
    HW = H * W

    # Query tile size: multiple of 128 dividing HW, else fall back to one tile.
    TQ = tq if (HW % tq == 0 and tq % 128 == 0) else HW

    # Free reshape: keep NCHW, flatten spatial into the lane axis.
    x_flat = x_nchw.reshape(B, C, HW)

    # Augment the value projection with an all-ones output channel: its
    # projected row is identically 1, so the aggregation matmul also produces
    # the softmax denominator (deferred normalization, zero extra passes).
    Wv_aug = jnp.concatenate([Wv, jnp.zeros((1, C), Wv.dtype)], axis=0)        # (C+1, C)
    bv_aug = jnp.concatenate([bv, jnp.ones((1,), bv.dtype)]).reshape(C + 1, 1)  # (C+1, 1)

    kernel = functools.partial(cca_kernel, H=H, W=W, TQ=TQ)

    out_flat = pl.pallas_call(
        kernel,
        out_shape=jax.ShapeDtypeStruct((B, C, HW), x_nchw.dtype),
        grid_spec=pltpu.PrefetchScalarGridSpec(
            num_scalar_prefetch=0,
            grid=(B, HW // TQ),
            in_specs=[
                pl.BlockSpec(memory_space=pltpu.SMEM),              # gamma (1,)
                pl.BlockSpec((Cr, C), lambda b, t: (0, 0)),         # Wq
                pl.BlockSpec((Cr, 1), lambda b, t: (0, 0)),         # bq
                pl.BlockSpec((Cr, C), lambda b, t: (0, 0)),         # Wk
                pl.BlockSpec((Cr, 1), lambda b, t: (0, 0)),         # bk
                pl.BlockSpec((C + 1, C), lambda b, t: (0, 0)),      # Wv (augmented)
                pl.BlockSpec((C + 1, 1), lambda b, t: (0, 0)),      # bv (augmented)
                pl.BlockSpec((1, C, HW), lambda b, t: (b, 0, 0)),   # x (all keys)
            ],
            out_specs=pl.BlockSpec((1, C, TQ), lambda b, t: (b, 0, t)),
        ),
        compiler_params=pltpu.CompilerParams(
            dimension_semantics=("parallel", "parallel"),
            # Toy shapes need ~2 MB; for production CCNet shapes size TQ (and
            # this limit) for v7x's 64 MiB VMEM as per the perf review.
            vmem_limit_bytes=32 * 1024 * 1024),
    )(gamma, Wq, bq.reshape(Cr, 1), Wk, bk.reshape(Cr, 1),
      Wv_aug, bv_aug, x_flat)

    return out_flat.reshape(B, C, H, W)


def cca_reference(x, params):
    """Pure-JAX transcription of the PyTorch forward (NCHW), for checking."""
    Wq, bq, Wk, bk, Wv, bv, gamma = params
    B, C, H, W = x.shape
    hp = jax.lax.Precision.HIGHEST
    q = jnp.einsum('bchw,dc->bdhw', x, Wq, precision=hp) + bq[None, :, None, None]
    k = jnp.einsum('bchw,dc->bdhw', x, Wk, precision=hp) + bk[None, :, None, None]
    v = jnp.einsum('bchw,dc->bdhw', x, Wv, precision=hp) + bv[None, :, None, None]

    energy_H = jnp.einsum('bdhw,bdgw->bhwg', q, k, precision=hp)  # (B,H,W,H)
    diag = jnp.eye(H, dtype=bool)[None, :, None, :]
    energy_H = jnp.where(diag, -jnp.inf, energy_H)
    energy_W = jnp.einsum('bdhw,bdhg->bhwg', q, k, precision=hp)  # (B,H,W,W)

    att = jax.nn.softmax(jnp.concatenate([energy_H, energy_W], axis=3), axis=3)
    att_H, att_W = att[..., :H], att[..., H:]

    out_H = jnp.einsum('bhwg,bdgw->bdhw', att_H, v, precision=hp)
    out_W = jnp.einsum('bhwg,bdhg->bdhw', att_W, v, precision=hp)
    return gamma[0] * (out_H + out_W) + x


def init_params(key, in_dim):
    cr = in_dim // 8
    ks = jax.random.split(key, 6)
    Wq = 0.1 * jax.random.normal(ks[0], (cr, in_dim), jnp.float32)
    bq = 0.1 * jax.random.normal(ks[1], (cr,), jnp.float32)
    Wk = 0.1 * jax.random.normal(ks[2], (cr, in_dim), jnp.float32)
    bk = 0.1 * jax.random.normal(ks[3], (cr,), jnp.float32)
    Wv = 0.1 * jax.random.normal(ks[4], (in_dim, in_dim), jnp.float32)
    bv = 0.1 * jax.random.normal(ks[5], (in_dim,), jnp.float32)
    # PyTorch initializes gamma to 0 (output == x); use a deterministic nonzero
    # value so the attention path is actually exercised by the check.
    gamma = jnp.array([0.7], jnp.float32)
    return (Wq, bq, Wk, bk, Wv, bv, gamma)


if __name__ == "__main__":
    B, C, H, W = 2, 32, 16, 16     # in_dim // 8 = 4 reduced channels
    key = jax.random.PRNGKey(0)
    k_x, k_p = jax.random.split(key)
    x = jax.random.normal(k_x, (B, C, H, W), jnp.float32)
    params = init_params(k_p, C)

    out = jax.jit(criss_cross_attention)(x, params)
    out = jax.block_until_ready(out)

    ref = jax.block_until_ready(cca_reference(x, params))
    assert out.shape == (B, C, H, W)
    err = float(jnp.max(jnp.abs(out - ref)))
    # f32 matmuls + approx-EUP reciprocal vs. f32 HIGHEST reference.
    assert jnp.allclose(out, ref, rtol=2e-2, atol=2e-2), err
    print("KERNEL_OK")
</pallas_src>

<mosaic_0001>
module attributes {stable_mosaic.version = 11 : i64} {
  func.func @cca_kernel(%arg0: i32, %arg1: i32, %arg2: memref<1xf32, #tpu.memory_space<smem>>, %arg3: memref<4x32xf32, #tpu.memory_space<vmem>>, %arg4: memref<4x1xf32, #tpu.memory_space<vmem>>, %arg5: memref<4x32xf32, #tpu.memory_space<vmem>>, %arg6: memref<4x1xf32, #tpu.memory_space<vmem>>, %arg7: memref<33x32xf32, #tpu.memory_space<vmem>>, %arg8: memref<33x1xf32, #tpu.memory_space<vmem>>, %arg9: memref<1x32x256xf32, #tpu.memory_space<vmem>>, %arg10: memref<1x32x128xf32, #tpu.memory_space<vmem>>) attributes {dimension_semantics = [#tpu.dimension_semantics<parallel>, #tpu.dimension_semantics<parallel>], iteration_bounds = array<i64: 2, 2>, scalar_prefetch = 0 : i64, scratch_operands = 0 : i64, tpu.core_type = #tpu.core_type<tc>, window_params = [{transform_indices = @transform_0, window_bounds = array<i64: 1>}, {pipeline_mode = #tpu.pipeline_mode<synchronous>, transform_indices = @transform_1, window_bounds = array<i64: 4, 32>}, {pipeline_mode = #tpu.pipeline_mode<synchronous>, transform_indices = @transform_2, window_bounds = array<i64: 4, 1>}, {pipeline_mode = #tpu.pipeline_mode<synchronous>, transform_indices = @transform_3, window_bounds = array<i64: 4, 32>}, {pipeline_mode = #tpu.pipeline_mode<synchronous>, transform_indices = @transform_4, window_bounds = array<i64: 4, 1>}, {pipeline_mode = #tpu.pipeline_mode<synchronous>, transform_indices = @transform_5, window_bounds = array<i64: 33, 32>}, {pipeline_mode = #tpu.pipeline_mode<synchronous>, transform_indices = @transform_6, window_bounds = array<i64: 33, 1>}, {transform_indices = @transform_7, window_bounds = array<i64: 1, 32, 256>}, {transform_indices = @transform_8, window_bounds = array<i64: 1, 32, 128>}]} {
    %c128_i32 = arith.constant 128 : i32
    %0 = arith.muli %arg1, %c128_i32 : i32
    %1 = tpu.assume_multiple %0, 128 : i32
    %c0 = arith.constant 0 : index
    %2 = memref.load %arg2[%c0] : memref<1xf32, #tpu.memory_space<smem>>
    %c0_0 = arith.constant 0 : index
    %c0_1 = arith.constant 0 : index
    %c0_2 = arith.constant 0 : index
    %3 = vector.load %arg9[%c0_0, %c0_1, %c0_2] : memref<1x32x256xf32, #tpu.memory_space<vmem>>, vector<1x32x256xf32>
    %4 = vector.shape_cast %3 : vector<1x32x256xf32> to vector<32x256xf32>
    %c0_3 = arith.constant 0 : index
    %c0_4 = arith.constant 0 : index
    %5 = arith.index_cast %1 : i32 to index
    %6 = vector.load %arg9[%c0_3, %c0_4, %5] : memref<1x32x256xf32, #tpu.memory_space<vmem>>, vector<1x32x128xf32>
    %7 = vector.shape_cast %6 : vector<1x32x128xf32> to vector<32x128xf32>
    %c0_5 = arith.constant 0 : index
    %c0_6 = arith.constant 0 : index
    %8 = vector.load %arg3[%c0_5, %c0_6] : memref<4x32xf32, #tpu.memory_space<vmem>>, vector<4x32xf32>
    %cst = arith.constant dense<0.000000e+00> : vector<4x128xf32>
    %9 = tpu.matmul %8, %7, %cst {dimension_numbers = #tpu.dot_dimension_numbers<[1], [0], [0], [1], [0, 0, 1, 1], [], []>} : vector<4x32xf32>, vector<32x128xf32>, vector<4x128xf32> -> vector<4x128xf32>
    %c0_7 = arith.constant 0 : index
    %c0_8 = arith.constant 0 : index
    %10 = vector.load %arg4[%c0_7, %c0_8] : memref<4x1xf32, #tpu.memory_space<vmem>>, vector<4x1xf32>
    %11 = vector.broadcast %10 : vector<4x1xf32> to vector<4x128xf32>
    %12 = arith.addf %9, %11 : vector<4x128xf32>
    %c0_9 = arith.constant 0 : index
    %c0_10 = arith.constant 0 : index
    %13 = vector.load %arg5[%c0_9, %c0_10] : memref<4x32xf32, #tpu.memory_space<vmem>>, vector<4x32xf32>
    %cst_11 = arith.constant dense<0.000000e+00> : vector<4x256xf32>
    %14 = tpu.matmul %13, %4, %cst_11 {dimension_numbers = #tpu.dot_dimension_numbers<[1], [0], [0], [1], [0, 0, 1, 1], [], []>} : vector<4x32xf32>, vector<32x256xf32>, vector<4x256xf32> -> vector<4x256xf32>
    %c0_12 = arith.constant 0 : index
    %c0_13 = arith.constant 0 : index
    %15 = vector.load %arg6[%c0_12, %c0_13] : memref<4x1xf32, #tpu.memory_space<vmem>>, vector<4x1xf32>
    %16 = vector.broadcast %15 : vector<4x1xf32> to vector<4x256xf32>
    %17 = arith.addf %14, %16 : vector<4x256xf32>
    %c0_14 = arith.constant 0 : index
    %c0_15 = arith.constant 0 : index
    %18 = vector.load %arg7[%c0_14, %c0_15] : memref<33x32xf32, #tpu.memory_space<vmem>>, vector<33x32xf32>
    %cst_16 = arith.constant dense<0.000000e+00> : vector<33x256xf32>
    %19 = tpu.matmul %18, %4, %cst_16 {dimension_numbers = #tpu.dot_dimension_numbers<[1], [0], [0], [1], [0, 0, 1, 1], [], []>} : vector<33x32xf32>, vector<32x256xf32>, vector<33x256xf32> -> vector<33x256xf32>
    %c0_17 = arith.constant 0 : index
    %c0_18 = arith.constant 0 : index
    %20 = vector.load %arg8[%c0_17, %c0_18] : memref<33x1xf32, #tpu.memory_space<vmem>>, vector<33x1xf32>
    %21 = vector.broadcast %20 : vector<33x1xf32> to vector<33x256xf32>
    %22 = arith.addf %19, %21 : vector<33x256xf32>
    %cst_19 = arith.constant dense<0.000000e+00> : vector<128x256xf32>
    %23 = tpu.matmul %12, %17, %cst_19 {dimension_numbers = #tpu.dot_dimension_numbers<[0], [0], [1], [1], [0, 1, 1, 1], [], []>} : vector<4x128xf32>, vector<4x256xf32>, vector<128x256xf32> -> vector<128x256xf32>
    %24 = tpu.iota {dimensions = array<i32: 0>} : vector<128x1xi32>
    %25 = vector.broadcast %1 : i32 to vector<128x1xi32>
    %26 = arith.addi %25, %24 : vector<128x1xi32>
    %27 = tpu.iota {dimensions = array<i32: 1>} : vector<1x256xi32>
    %c4_i32 = arith.constant 4 : i32
    %28 = vector.broadcast %c4_i32 : i32 to vector<128x1xi32>
    %29 = arith.shrsi %26, %28 : vector<128x1xi32>
    %c15_i32 = arith.constant 15 : i32
    %30 = vector.broadcast %c15_i32 : i32 to vector<128x1xi32>
    %31 = arith.andi %26, %30 : vector<128x1xi32>
    %c4_i32_20 = arith.constant 4 : i32
    %32 = vector.broadcast %c4_i32_20 : i32 to vector<1x256xi32>
    %33 = arith.shrsi %27, %32 : vector<1x256xi32>
    %c15_i32_21 = arith.constant 15 : i32
    %34 = vector.broadcast %c15_i32_21 : i32 to vector<1x256xi32>
    %35 = arith.andi %27, %34 : vector<1x256xi32>
    %36 = vector.broadcast %29 : vector<128x1xi32> to vector<128x256xi32>
    %37 = vector.broadcast %33 : vector<1x256xi32> to vector<128x256xi32>
    %38 = arith.cmpi eq, %36, %37 : vector<128x256xi32>
    %39 = vector.broadcast %31 : vector<128x1xi32> to vector<128x256xi32>
    %40 = vector.broadcast %35 : vector<1x256xi32> to vector<128x256xi32>
    %41 = arith.cmpi eq, %39, %40 : vector<128x256xi32>
    %42 = arith.ori %38, %41 : vector<128x256xi1>
    %cst_22 = arith.constant 0xFF800000 : f32
    %43 = vector.broadcast %cst_22 : f32 to vector<128x256xf32>
    %44 = arith.select %42, %23, %43 : vector<128x256xi1>, vector<128x256xf32>
    %cst_23 = arith.constant dense<0xFF800000> : vector<128xf32>
    %45 = vector.multi_reduction <maximumf>, %44, %cst_23 [1] : vector<128x256xf32> to vector<128xf32>
    %46 = vector.shape_cast %45 : vector<128xf32> to vector<128x1xf32>
    %47 = vector.broadcast %46 : vector<128x1xf32> to vector<128x256xf32>
    %48 = arith.subf %44, %47 : vector<128x256xf32>
    %49 = math.exp %48 : vector<128x256xf32>
    %cst_24 = arith.constant dense<0.000000e+00> : vector<33x128xf32>
    %50 = tpu.matmul %22, %49, %cst_24 {dimension_numbers = #tpu.dot_dimension_numbers<[1], [1], [0], [0], [0, 0, 1, 0], [], []>} : vector<33x256xf32>, vector<128x256xf32>, vector<33x128xf32> -> vector<33x128xf32>
    %51 = vector.extract_strided_slice %50 {offsets = [32, 0], sizes = [1, 128], strides = [1, 1]} : vector<33x128xf32> to vector<1x128xf32>
    %52 = tpu.reciprocal %51 {approx = true} : vector<1x128xf32> -> vector<1x128xf32>
    %53 = vector.extract_strided_slice %50 {offsets = [0, 0], sizes = [32, 128], strides = [1, 1]} : vector<33x128xf32> to vector<32x128xf32>
    %54 = vector.broadcast %52 : vector<1x128xf32> to vector<32x128xf32>
    %55 = arith.mulf %53, %54 : vector<32x128xf32>
    %56 = vector.broadcast %2 : f32 to vector<32x128xf32>
    %57 = arith.mulf %56, %55 : vector<32x128xf32>
    %58 = arith.addf %57, %7 : vector<32x128xf32>
    %c0_25 = arith.constant 0 : index
    %c0_26 = arith.constant 0 : index
    %c0_27 = arith.constant 0 : index
    %59 = vector.load %arg10[%c0_25, %c0_26, %c0_27] : memref<1x32x128xf32, #tpu.memory_space<vmem>>, vector<1x32x128xf32>
    %60 = vector.shape_cast %59 : vector<1x32x128xf32> to vector<32x128xf32>
    %61 = vector.shape_cast %58 : vector<32x128xf32> to vector<1x32x128xf32>
    tpu.vector_store %arg10[%c0_25, %c0_26, %c0_27], %61 {strides = array<i32>} : memref<1x32x128xf32, #tpu.memory_space<vmem>>, vector<1x32x128xf32>,
    return
  }
  func.func @transform_0(%arg0: i32, %arg1: i32) -> i32 {
    %c0_i32 = arith.constant 0 : i32
    %c0_i32_0 = arith.constant 0 : i32
    return %c0_i32 : i32
  }
  func.func @transform_1(%arg0: i32, %arg1: i32) -> (i32, i32) {
    %c0_i32 = arith.constant 0 : i32
    %c0_i32_0 = arith.constant 0 : i32
    %c0_i32_1 = arith.constant 0 : i32
    return %c0_i32, %c0_i32_0 : i32, i32
  }
  func.func @transform_2(%arg0: i32, %arg1: i32) -> (i32, i32) {
    %c0_i32 = arith.constant 0 : i32
    %c0_i32_0 = arith.constant 0 : i32
    %c0_i32_1 = arith.constant 0 : i32
    return %c0_i32, %c0_i32_0 : i32, i32
  }
  func.func @transform_3(%arg0: i32, %arg1: i32) -> (i32, i32) {
    %c0_i32 = arith.constant 0 : i32
    %c0_i32_0 = arith.constant 0 : i32
    %c0_i32_1 = arith.constant 0 : i32
    return %c0_i32, %c0_i32_0 : i32, i32
  }
  func.func @transform_4(%arg0: i32, %arg1: i32) -> (i32, i32) {
    %c0_i32 = arith.constant 0 : i32
    %c0_i32_0 = arith.constant 0 : i32
    %c0_i32_1 = arith.constant 0 : i32
    return %c0_i32, %c0_i32_0 : i32, i32
  }
  func.func @transform_5(%arg0: i32, %arg1: i32) -> (i32, i32) {
    %c0_i32 = arith.constant 0 : i32
    %c0_i32_0 = arith.constant 0 : i32
    %c0_i32_1 = arith.constant 0 : i32
    return %c0_i32, %c0_i32_0 : i32, i32
  }
  func.func @transform_6(%arg0: i32, %arg1: i32) -> (i32, i32) {
    %c0_i32 = arith.constant 0 : i32
    %c0_i32_0 = arith.constant 0 : i32
    %c0_i32_1 = arith.constant 0 : i32
    return %c0_i32, %c0_i32_0 : i32, i32
  }
  func.func @transform_7(%arg0: i32, %arg1: i32) -> (i32, i32, i32) {
    %c0_i32 = arith.constant 0 : i32
    %c0_i32_0 = arith.constant 0 : i32
    %c0_i32_1 = arith.constant 0 : i32
    return %arg0, %c0_i32, %c0_i32_0 : i32, i32, i32
  }
  func.func @transform_8(%arg0: i32, %arg1: i32) -> (i32, i32, i32) {
    %c0_i32 = arith.constant 0 : i32
    %c0_i32_0 = arith.constant 0 : i32
    return %arg0, %c0_i32, %arg1 : i32, i32, i32
  }
}

</mosaic_0001>

<llo_original>
// kernel: criss_cross_attention.1
$region0: #{criss_cross_attention.1}
  #allocation0 [shape = 'u32[]', space=smem, size = 0x4, offset = 0x4, fixed_abs, tag = 'smem constant byte address 0x4 - core index']
  #allocation1 [shape = 'u32[144,128]{1,0:T(1,128)}', space=vmem, size = 0x12000, scoped, tag = 'internal scratch']
  #allocation2 [shape = 'f32[1]{0:T(128)S(6)}', space=smem, size = 0x200, scoped, tag = 'scoped memory for criss_cross_attention.1']
  %s0 = inlined_call_operand.<no memory space> [shape: f32[1], index: 0, kind: input, shape index: {}]
  %s1 = inlined_call_operand.vmem [shape: f32[4,32], index: 1, kind: input, shape index: {}]
  %s2 = inlined_call_operand.vmem [shape: f32[4,1], index: 2, kind: input, shape index: {}]
  %s3 = inlined_call_operand.vmem [shape: f32[4,32], index: 3, kind: input, shape index: {}]
  %s4 = inlined_call_operand.vmem [shape: f32[4,1], index: 4, kind: input, shape index: {}]
  %s5 = inlined_call_operand.vmem [shape: f32[33,32], index: 5, kind: input, shape index: {}]
  %s6 = inlined_call_operand.vmem [shape: f32[33,1], index: 6, kind: input, shape index: {}]
  %s7 = inlined_call_operand.vmem [shape: f32[2,32,256], index: 7, kind: input, shape index: {}]
  %s8 = inlined_call_operand.vmem [shape: f32[2,32,256], index: 8, kind: output, shape index: {}]
  %s9 = sld [smem:[#allocation0]]
  $region99: #{criss_cross_attention.1} parent=0
    _
  %s11 = ssub.s32 1, %s9
  %s12 = scalar_select 0, %s11, %s9
  %13 = sst [smem:[#allocation2]] %s0
  $region1: #{criss_cross_attention.1} parent=0
    #allocation3 [shape = 'u8[32768]{0}', space=vmem, size = 0x8000, scoped, tag = 'output window, operand 0']
    loop: start=0, step=1, limit=6
    $region2: #{criss_cross_attention.1} parent=1 // loop_pre_header
      _
    $region3: #{criss_cross_attention.1} parent=1 // loop_header
      %s15 = sphi 0, %s19
      %p16 = scmp.ge.s32.totalorder %s15, 6
      %s22 = sphi 0, %s34
      %s23 = sphi 0, %s30
      %s24 = sphi 0, %s22
      %s25 = sphi 0, %s23
      %s26 = sphi 0, %s24
      %s27 = sphi 0, %s25
      %s35 = sphi 0, %s35
      %s37 = sphi 0, %s35
      %s38 = sphi 0, %s37
      %s52 = sphi 0, %s38
      %s56 = sphi 0, %s56
      %s58 = sphi 0, %s56
      %s59 = sphi 0, %s58
      %s73 = sphi 0, %s59
      %s77 = sphi 0, %s77
      %s79 = sphi 0, %s77
      %s80 = sphi 0, %s79
      %s94 = sphi 0, %s80
      %s98 = sphi 0, %s98
      %s100 = sphi 0, %s98
      %s101 = sphi 0, %s100
      %s115 = sphi 0, %s101
      %s119 = sphi 0, %s119
      %s121 = sphi 0, %s119
      %s122 = sphi 0, %s121
      %s136 = sphi 0, %s122
      %s140 = sphi 0, %s140
      %s142 = sphi 0, %s140
      %s143 = sphi 0, %s142
      %s157 = sphi 0, %s143
      %s161 = sphi 0, %s161
      %s163 = sphi 0, %s161
      %s164 = sphi 0, %s163
      %s178 = sphi 0, %s164
      %s184 = sphi 0, %s186
      %s187 = sphi 0, %s184
      %s188 = sphi 0, %s187
      %s204 = sphi 0, %s188
      %s212 = sphi 0, %s214
      %s215 = sphi 0, %s212
      %s216 = sphi 0, %s215
      %s232 = sphi 0, %s216
    $region4: #{criss_cross_attention.1} parent=1 // loop_header_branch
      %18 = sbr.rel (%p16) target = $region8
    $region5: #{criss_cross_attention.1} parent=1 // loop_body
      %s20 = ssub.s32 %s15, 1
      %s21 = ssub.s32 %s15, 2
      %s28 = sadd.s32 1, %s23
      %p29 = scmp.ge.s32.totalorder %s28, 2
      %s30 = scalar_select %p29, 0, %s28
      %s31 = sadd.s32 1, %s22
      %s32 = scalar_select %p29, %s31, %s22
      %p33 = scmp.ge.s32.totalorder %s32, 2
      %s34 = scalar_select %p33, 0, %s32
      %s36 = sadd.s32 %s35, 1
      %p39 = scmp.eq.s32.totalorder %s15, 3
      %p40 = scmp.ne.s32.totalorder %s35, %s37
      %p41 = scmp.eq.s32.totalorder %s15, 0
      %p42 = por %p40, %p41
      %p43 = scmp.ne.s32.totalorder %s35, %s37
      %p44 = scmp.eq.s32.totalorder %s20, 3
      %p45 = por %p43, %p44
      %p46 = scmp.ne.s32.totalorder %s37, %s38
      %p47 = scmp.eq.s32.totalorder %s20, 0
      %p48 = por %p46, %p47
      %p49 = scmp.ne.s32.totalorder %s37, %s38
      %p50 = scmp.eq.s32.totalorder %s21, 3
      %p51 = por %p49, %p50
      %p53 = scmp.ne.s32.totalorder %s38, %s52
      %p54 = scmp.eq.s32.totalorder %s21, 0
      %p55 = por %p53, %p54
      %s57 = sadd.s32 %s56, 1
      %p60 = scmp.eq.s32.totalorder %s15, 3
      %p61 = scmp.ne.s32.totalorder %s56, %s58
      %p62 = scmp.eq.s32.totalorder %s15, 0
      %p63 = por %p61, %p62
      %p64 = scmp.ne.s32.totalorder %s56, %s58
      %p65 = scmp.eq.s32.totalorder %s20, 3
      %p66 = por %p64, %p65
      %p67 = scmp.ne.s32.totalorder %s58, %s59
      %p68 = scmp.eq.s32.totalorder %s20, 0
      %p69 = por %p67, %p68
      %p70 = scmp.ne.s32.totalorder %s58, %s59
      %p71 = scmp.eq.s32.totalorder %s21, 3
      %p72 = por %p70, %p71
      %p74 = scmp.ne.s32.totalorder %s59, %s73
      %p75 = scmp.eq.s32.totalorder %s21, 0
      %p76 = por %p74, %p75
      %s78 = sadd.s32 %s77, 1
      %p81 = scmp.eq.s32.totalorder %s15, 3
      %p82 = scmp.ne.s32.totalorder %s77, %s79
      %p83 = scmp.eq.s32.totalorder %s15, 0
      %p84 = por %p82, %p83
      %p85 = scmp.ne.s32.totalorder %s77, %s79
      %p86 = scmp.eq.s32.totalorder %s20, 3
      %p87 = por %p85, %p86
      %p88 = scmp.ne.s32.totalorder %s79, %s80
      %p89 = scmp.eq.s32.totalorder %s20, 0
      %p90 = por %p88, %p89
      %p91 = scmp.ne.s32.totalorder %s79, %s80
      %p92 = scmp.eq.s32.totalorder %s21, 3
      %p93 = por %p91, %p92
      %p95 = scmp.ne.s32.totalorder %s80, %s94
      %p96 = scmp.eq.s32.totalorder %s21, 0
      %p97 = por %p95, %p96
      %s99 = sadd.s32 %s98, 1
      %p102 = scmp.eq.s32.totalorder %s15, 3
      %p103 = scmp.ne.s32.totalorder %s98, %s100
      %p104 = scmp.eq.s32.totalorder %s15, 0
      %p105 = por %p103, %p104
      %p106 = scmp.ne.s32.totalorder %s98, %s100
      %p107 = scmp.eq.s32.totalorder %s20, 3
      %p108 = por %p106, %p107
      %p109 = scmp.ne.s32.totalorder %s100, %s101
      %p110 = scmp.eq.s32.totalorder %s20, 0
      %p111 = por %p109, %p110
      %p112 = scmp.ne.s32.totalorder %s100, %s101
      %p113 = scmp.eq.s32.totalorder %s21, 3
      %p114 = por %p112, %p113
      %p116 = scmp.ne.s32.totalorder %s101, %s115
      %p117 = scmp.eq.s32.totalorder %s21, 0
      %p118 = por %p116, %p117
      %s120 = sadd.s32 %s119, 1
      %p123 = scmp.eq.s32.totalorder %s15, 3
      %p124 = scmp.ne.s32.totalorder %s119, %s121
      %p125 = scmp.eq.s32.totalorder %s15, 0
      %p126 = por %p124, %p125
      %p127 = scmp.ne.s32.totalorder %s119, %s121
      %p128 = scmp.eq.s32.totalorder %s20, 3
      %p129 = por %p127, %p128
      %p130 = scmp.ne.s32.totalorder %s121, %s122
      %p131 = scmp.eq.s32.totalorder %s20, 0
      %p132 = por %p130, %p131
      %p133 = scmp.ne.s32.totalorder %s121, %s122
      %p134 = scmp.eq.s32.totalorder %s21, 3
      %p135 = por %p133, %p134
      %p137 = scmp.ne.s32.totalorder %s122, %s136
      %p138 = scmp.eq.s32.totalorder %s21, 0
      %p139 = por %p137, %p138
      %s141 = sadd.s32 %s140, 1
      %p144 = scmp.eq.s32.totalorder %s15, 3
      %p145 = scmp.ne.s32.totalorder %s140, %s142
      %p146 = scmp.eq.s32.totalorder %s15, 0
      %p147 = por %p145, %p146
      %p148 = scmp.ne.s32.totalorder %s140, %s142
      %p149 = scmp.eq.s32.totalorder %s20, 3
      %p150 = por %p148, %p149
      %p151 = scmp.ne.s32.totalorder %s142, %s143
      %p152 = scmp.eq.s32.totalorder %s20, 0
      %p153 = por %p151, %p152
      %p154 = scmp.ne.s32.totalorder %s142, %s143
      %p155 = scmp.eq.s32.totalorder %s21, 3
      %p156 = por %p154, %p155
      %p158 = scmp.ne.s32.totalorder %s143, %s157
      %p159 = scmp.eq.s32.totalorder %s21, 0
      %p160 = por %p158, %p159
      %s162 = sadd.s32 %s161, 1
      %p165 = scmp.eq.s32.totalorder %s15, 3
      %p166 = scmp.ne.s32.totalorder %s161, %s163
      %p167 = scmp.eq.s32.totalorder %s15, 0
      %p168 = por %p166, %p167
      %p169 = scmp.ne.s32.totalorder %s161, %s163
      %p170 = scmp.eq.s32.totalorder %s20, 3
      %p171 = por %p169, %p170
      %p172 = scmp.ne.s32.totalorder %s163, %s164
      %p173 = scmp.eq.s32.totalorder %s20, 0
      %p174 = por %p172, %p173
      %p175 = scmp.ne.s32.totalorder %s163, %s164
      %p176 = scmp.eq.s32.totalorder %s21, 3
      %p177 = por %p175, %p176
      %p179 = scmp.ne.s32.totalorder %s164, %s178
      %p180 = scmp.eq.s32.totalorder %s21, 0
      %p181 = por %p179, %p180
      %s182 = ssub.s32 %s22, %s34
      %p183 = scmp.eq.s32.totalorder %s182, 0
      %s185 = sadd.s32 %s184, 1
      %s186 = scalar_select %p183, %s184, %s185
      %p189 = pneg %p183
      %p190 = scmp.eq.s32.totalorder %s15, 3
      %p191 = por %p189, %p190
      %p192 = scmp.ne.s32.totalorder %s184, %s187
      %p193 = scmp.eq.s32.totalorder %s15, 0
      %p194 = por %p192, %p193
      %p195 = scmp.ne.s32.totalorder %s184, %s187
      %p196 = scmp.eq.s32.totalorder %s20, 3
      %p197 = por %p195, %p196
      %p198 = scmp.ne.s32.totalorder %s187, %s188
      %p199 = scmp.eq.s32.totalorder %s20, 0
      %p200 = por %p198, %p199
      %p201 = scmp.ne.s32.totalorder %s187, %s188
      %p202 = scmp.eq.s32.totalorder %s21, 3
      %p203 = por %p201, %p202
      %p205 = scmp.ne.s32.totalorder %s188, %s204
      %p206 = scmp.eq.s32.totalorder %s21, 0
      %p207 = por %p205, %p206
      %s208 = ssub.s32 %s22, %s34
      %s209 = ssub.s32 %s23, %s30
      %s210 = sor.u32 %s208, %s209
      %p211 = scmp.eq.s32.totalorder %s210, 0
      %s213 = sadd.s32 %s212, 1
      %s214 = scalar_select %p211, %s212, %s213
      %p217 = pneg %p211
      %p218 = scmp.eq.s32.totalorder %s15, 3
      %p219 = por %p217, %p218
      %p220 = scmp.ne.s32.totalorder %s212, %s215
      %p221 = scmp.eq.s32.totalorder %s15, 0
      %p222 = por %p220, %p221
      %p223 = scmp.ne.s32.totalorder %s212, %s215
      %p224 = scmp.eq.s32.totalorder %s20, 3
      %p225 = por %p223, %p224
      %p226 = scmp.ne.s32.totalorder %s215, %s216
      %p227 = scmp.eq.s32.totalorder %s20, 0
      %p228 = por %p226, %p227
      %p229 = scmp.ne.s32.totalorder %s215, %s216
      %p230 = scmp.eq.s32.totalorder %s21, 3
      %p231 = por %p229, %p230
      %p233 = scmp.ne.s32.totalorder %s216, %s232
      %p234 = scmp.eq.s32.totalorder %s21, 0
      %p235 = por %p233, %p234
      %p236 = scmp.le.s32.totalorder 1, %s15
      %p237 = scmp.lt.s32.totalorder %s15, 5
      %p238 = pnand %p236, %p237
      %p239 = pneg %p238
      // Predicated region
      $region9: #{criss_cross_attention.1} parent=5 // pred_check
        _
      $region10: #{criss_cross_attention.1} parent=5 // pred_check_branch
        %241 = sbr.rel (%p238) target = $region12
      $region11: #{criss_cross_attention.1} parent=5 // pred_region
        %s242 = ssub.s32 %s15, 1
        // Predicated region
        $region13: #{criss_cross_attention.1} parent=11 // pred_check
          %p243 = pneg %p48
        $region14: #{criss_cross_attention.1} parent=11 // pred_check_branch
          %245 = sbr.rel (%p243) target = $region16
        $region15: #{criss_cross_attention.1} parent=11 // pred_region
          _
        $region16: #{criss_cross_attention.1} parent=11 // pred_fallthru
          _
        // Predicated region
        $region17: #{criss_cross_attention.1} parent=11 // pred_check
          %p246 = pneg %p69
        $region18: #{criss_cross_attention.1} parent=11 // pred_check_branch
          %248 = sbr.rel (%p246) target = $region20
        $region19: #{criss_cross_attention.1} parent=11 // pred_region
          _
        $region20: #{criss_cross_attention.1} parent=11 // pred_fallthru
          _
        // Predicated region
        $region21: #{criss_cross_attention.1} parent=11 // pred_check
          %p249 = pneg %p90
        $region22: #{criss_cross_attention.1} parent=11 // pred_check_branch
          %251 = sbr.rel (%p249) target = $region24
        $region23: #{criss_cross_attention.1} parent=11 // pred_region
          _
        $region24: #{criss_cross_attention.1} parent=11 // pred_fallthru
          _
        // Predicated region
        $region25: #{criss_cross_attention.1} parent=11 // pred_check
          %p252 = pneg %p111
        $region26: #{criss_cross_attention.1} parent=11 // pred_check_branch
          %254 = sbr.rel (%p252) target = $region28
        $region27: #{criss_cross_attention.1} parent=11 // pred_region
          _
        $region28: #{criss_cross_attention.1} parent=11 // pred_fallthru
          _
        // Predicated region
        $region29: #{criss_cross_attention.1} parent=11 // pred_check
          %p255 = pneg %p132
        $region30: #{criss_cross_attention.1} parent=11 // pred_check_branch
          %257 = sbr.rel (%p255) target = $region32
        $region31: #{criss_cross_attention.1} parent=11 // pred_region
          _
        $region32: #{criss_cross_attention.1} parent=11 // pred_fallthru
          _
        // Predicated region
        $region33: #{criss_cross_attention.1} parent=11 // pred_check
          %p258 = pneg %p153
        $region34: #{criss_cross_attention.1} parent=11 // pred_check_branch
          %260 = sbr.rel (%p258) target = $region36
        $region35: #{criss_cross_attention.1} parent=11 // pred_region
          _
        $region36: #{criss_cross_attention.1} parent=11 // pred_fallthru
          _
        // Predicated region
        $region37: #{criss_cross_attention.1} parent=11 // pred_check
          %p261 = pneg %p174
        $region38: #{criss_cross_attention.1} parent=11 // pred_check_branch
          %263 = sbr.rel (%p261) target = $region40
        $region39: #{criss_cross_attention.1} parent=11 // pred_region
          _
        $region40: #{criss_cross_attention.1} parent=11 // pred_fallthru
          _
      $region12: #{criss_cross_attention.1} parent=5 // pred_fallthru
        _
      %p264 = scmp.lt.s32.totalorder %s15, 4
      // Predicated region
      $region41: #{criss_cross_attention.1} parent=5 // pred_check
        %p265 = pneg %p264
      $region42: #{criss_cross_attention.1} parent=5 // pred_check_branch
        %267 = sbr.rel (%p265) target = $region44
      $region43: #{criss_cross_attention.1} parent=5 // pred_region
        // Predicated region
        $region45: #{criss_cross_attention.1} parent=43 // pred_check
          %p268 = pneg %p194
        $region46: #{criss_cross_attention.1} parent=43 // pred_check_branch
          %270 = sbr.rel (%p268) target = $region48
        $region47: #{criss_cross_attention.1} parent=43 // pred_region
          %p271 = scmp.lt.s32.totalorder %s22, 1
          %s272 = scalar_select %p271, %s22, 1
          %s273 = smul.addr %s272, 8
          %s274 = smul.addr %s273, 8
          %s275 = scalar_lea.vmem %s7, %s274
        $region48: #{criss_cross_attention.1} parent=43 // pred_fallthru
          _
      $region44: #{criss_cross_attention.1} parent=5 // pred_fallthru
        _
      %p276 = scmp.le.s32.totalorder 1, %s15
      %p277 = scmp.lt.s32.totalorder %s15, 5
      %p278 = pnand %p276, %p277
      %p279 = pneg %p278
      // Predicated region
      $region49: #{criss_cross_attention.1} parent=5 // pred_check
        _
      $region50: #{criss_cross_attention.1} parent=5 // pred_check_branch
        %281 = sbr.rel (%p278) target = $region52
      $region51: #{criss_cross_attention.1} parent=5 // pred_region
        %s282 = ssub.s32 %s15, 1
        %p283 = pneg %p48
        %p284 = pneg %p45
        %p285 = pneg %p69
        %p286 = pneg %p66
        %p287 = pneg %p90
        %p288 = pneg %p87
        %p289 = pneg %p111
        %p290 = pneg %p108
        %p291 = pneg %p132
        %p292 = pneg %p129
        %p293 = pneg %p153
        %p294 = pneg %p150
        %p295 = pneg %p174
        %p296 = pneg %p171
        %p297 = scmp.lt.s32.totalorder %s24, 1
        %s298 = scalar_select %p297, %s24, 1
        %s299 = smul.addr %s298, 8
        %s300 = smul.addr %s299, 8
        %s301 = scalar_lea.vmem %s7, %s300
        %p302 = pneg %p200
        %p303 = pneg %p197
        %p304 = pneg %p228
        %p305 = pneg %p225
        %s306 = sand.u32 %s215, 1
        %s307 = sand.u32 %s215, 1
        %s308 = smul.addr %s307, 32
        %s309 = scalar_lea.vmem [#allocation3], %s308
        %p310 = scmp.lt.s32.totalorder %s24, 1
        %s311 = scalar_select %p310, %s24, 1
        %s312 = smul.addr %s311, 8
        %s313 = smul.addr %s312, 8
        %s314 = scalar_lea.vmem %s7, %s313
        %s315 = smul.u32 %s25, 128
        %s316 = sld [smem:[#allocation2]]
        %v317 = vld [vmem:[%s314] sm:$0xff]
        %v318 = vld [vmem:[%s314 + $0x8] sm:$0xff]
        %v319 = vld [vmem:[%s314 + $0x10] sm:$0xff]
        %v320 = vld [vmem:[%s314 + $0x18] sm:$0xff]
        %v321 = vld [vmem:[%s314 + $0x20] sm:$0xff]
        %v322 = vld [vmem:[%s314 + $0x28] sm:$0xff]
        %v323 = vld [vmem:[%s314 + $0x30] sm:$0xff]
        %v324 = vld [vmem:[%s314 + $0x38] sm:$0xff]
        %s325 = sshra.s32 %s315, 7
        %s326 = sand.u32 %s315, 127
        %s327 = smul.addr %s325, 8
        %s328 = scalar_lea.vmem %s314, %s327
        %v329 = vld [vmem:[%s328] sm:$0xff]
        %v330 = vld [vmem:[%s328 + $0x10] sm:$0xff]
        %v331 = vld [vmem:[%s328 + $0x20] sm:$0xff]
        %v332 = vld [vmem:[%s328 + $0x30] sm:$0xff]
        %v333 = vld [vmem:[%s1] sm:$0xf]
        %v334 = vld [vmem:[%s2] sm:$0xf]
        %336 = vset.pattern.permute.xlu0 0
        %337 = vperm.xlu0 %336, %v334
        %v338 = vpop.permute.xlu0 %337
        %vm340 = vcmask 261120
        %v342 = vsel %vm340, %v333, 0
        %344 = vmatprep.subr.mxu0 0.0
        %345 = vmatpush1.msra.mxu0 %v329
        %346 = vmatprep.subr.mxu0 0.0
        %347 = vmatpush1.msra.mxu0 %v330
        %348 = vmatprep.subr.mxu0 0.0
        %349 = vmatpush1.msra.mxu0 %v331
        %350 = vmatprep.subr.mxu0 0.0
        %351 = vmatpush1.msra.mxu0 %v332
        %352 = vmatprep.subr.mxu0 0.0
        %353 = vmatpush1.msra.mxu0 0.0
        %354 = vmatprep.subr.mxu0 0.0
        %355 = vmatpush1.msra.mxu0 0.0
        %356 = vmatprep.subr.mxu0 0.0
        %357 = vmatpush1.msra.mxu0 0.0
        %358 = vmatprep.subr.mxu0 0.0
        %359 = vmatpush1.msra.mxu0 0.0
        %360 = vmatprep.subr.mxu0 0.0
        %361 = vmatpush1.msra.mxu0 0.0
        %362 = vmatprep.subr.mxu0 0.0
        %363 = vmatpush1.msra.mxu0 0.0
        %364 = vmatprep.subr.mxu0 0.0
        %365 = vmatpush1.msra.mxu0 0.0
        %366 = vmatprep.subr.mxu0 0.0
        %367 = vmatpush1.msra.mxu0 0.0
        %368 = vmatprep.subr.mxu0 0.0
        %369 = vmatpush1.msra.mxu0 0.0
        %370 = vmatprep.subr.mxu0 0.0
        %371 = vmatpush1.msra.mxu0 0.0
        %372 = vmatprep.subr.mxu0 0.0
        %373 = vmatpush1.msra.mxu0 0.0
        %374 = vmatprep.subr.mxu0 0.0
        %375 = vmatpush1.msra.mxu0 0.0
        %376 = vmatprep.subr.mxu0 0.0
        %377 = vmatpush1.msra.mxu0 0.0
        %378 = vmatprep.subr.mxu0 0.0
        %379 = vmatpush1.msra.mxu0 0.0
        %380 = vmatprep.subr.mxu0 0.0
        %381 = vmatpush1.msra.mxu0 0.0
        %382 = vmatprep.subr.mxu0 0.0
        %383 = vmatpush1.msra.mxu0 0.0
        %384 = vmatprep.subr.mxu0 0.0
        %385 = vmatpush1.msra.mxu0 0.0
        %386 = vmatprep.subr.mxu0 0.0
        %387 = vmatpush1.msra.mxu0 0.0
        %388 = vmatprep.subr.mxu0 0.0
        %389 = vmatpush1.msra.mxu0 0.0
        %390 = vmatprep.subr.mxu0 0.0
        %391 = vmatpush1.msra.mxu0 0.0
        %392 = vmatprep.subr.mxu0 0.0
        %393 = vmatpush1.msra.mxu0 0.0
        %394 = vmatprep.subr.mxu0 0.0
        %395 = vmatpush1.msra.mxu0 0.0
        %396 = vmatprep.subr.mxu0 0.0
        %397 = vmatpush1.msra.mxu0 0.0
        %398 = vmatprep.subr.mxu0 0.0
        %399 = vmatpush1.msra.mxu0 0.0
        %400 = vmatprep.subr.mxu0 0.0
        %401 = vmatpush1.msra.mxu0 0.0
        %402 = vmatprep.subr.mxu0 0.0
        %403 = vmatpush1.msra.mxu0 0.0
        %404 = vmatprep.subr.mxu0 0.0
        %405 = vmatpush1.msra.mxu0 0.0
        %406 = vmatprep.subr.mxu0 0.0
        %407 = vmatpush1.msra.mxu0 0.0
        %408 = vmatprep.mubr.f32.mxu0 0.0
        %409 = vmatmul.mubr.f32.gmra.mrb[0].mxu0 %v342
        %v410 = vpop.f32.mrb[0].mxu0
        %v411 = vadd.f32 %v338, %v410
        %v412 = vpop.f32.mrb[0].mxu0
        %413 = vdwg.mxu0
        %v414 = vld [vmem:[%s3] sm:$0xf]
        %v415 = vld [vmem:[%s4] sm:$0xf]
        %417 = vset.pattern.permute.xlu0 0
        %418 = vperm.xlu0 %417, %v415
        %v419 = vpop.permute.xlu0 %418
        %v422 = vsel %vm340, %v414, 0
        %424 = vmatprep.subr.mxu0 %v318
        %425 = vmatpush1.msra.mxu0 %v317
        %426 = vmatprep.subr.mxu0 %v320
        %427 = vmatpush1.msra.mxu0 %v319
        %428 = vmatprep.subr.mxu0 %v322
        %429 = vmatpush1.msra.mxu0 %v321
        %430 = vmatprep.subr.mxu0 %v324
        %431 = vmatpush1.msra.mxu0 %v323
        %432 = vmatprep.subr.mxu0 0.0
        %433 = vmatpush1.msra.mxu0 0.0
        %434 = vmatprep.subr.mxu0 0.0
        %435 = vmatpush1.msra.mxu0 0.0
        %436 = vmatprep.subr.mxu0 0.0
        %437 = vmatpush1.msra.mxu0 0.0
        %438 = vmatprep.subr.mxu0 0.0
        %439 = vmatpush1.msra.mxu0 0.0
        %440 = vmatprep.subr.mxu0 0.0
        %441 = vmatpush1.msra.mxu0 0.0
        %442 = vmatprep.subr.mxu0 0.0
        %443 = vmatpush1.msra.mxu0 0.0
        %444 = vmatprep.subr.mxu0 0.0
        %445 = vmatpush1.msra.mxu0 0.0
        %446 = vmatprep.subr.mxu0 0.0
        %447 = vmatpush1.msra.mxu0 0.0
        %448 = vmatprep.subr.mxu0 0.0
        %449 = vmatpush1.msra.mxu0 0.0
        %450 = vmatprep.subr.mxu0 0.0
        %451 = vmatpush1.msra.mxu0 0.0
        %452 = vmatprep.subr.mxu0 0.0
        %453 = vmatpush1.msra.mxu0 0.0
        %454 = vmatprep.subr.mxu0 0.0
        %455 = vmatpush1.msra.mxu0 0.0
        %456 = vmatprep.subr.mxu0 0.0
        %457 = vmatpush1.msra.mxu0 0.0
        %458 = vmatprep.subr.mxu0 0.0
        %459 = vmatpush1.msra.mxu0 0.0
        %460 = vmatprep.subr.mxu0 0.0
        %461 = vmatpush1.msra.mxu0 0.0
        %462 = vmatprep.subr.mxu0 0.0
        %463 = vmatpush1.msra.mxu0 0.0
        %464 = vmatprep.subr.mxu0 0.0
        %465 = vmatpush1.msra.mxu0 0.0
        %466 = vmatprep.subr.mxu0 0.0
        %467 = vmatpush1.msra.mxu0 0.0
        %468 = vmatprep.subr.mxu0 0.0
        %469 = vmatpush1.msra.mxu0 0.0
        %470 = vmatprep.subr.mxu0 0.0
        %471 = vmatpush1.msra.mxu0 0.0
        %472 = vmatprep.subr.mxu0 0.0
        %473 = vmatpush1.msra.mxu0 0.0
        %474 = vmatprep.subr.mxu0 0.0
        %475 = vmatpush1.msra.mxu0 0.0
        %476 = vmatprep.subr.mxu0 0.0
        %477 = vmatpush1.msra.mxu0 0.0
        %478 = vmatprep.subr.mxu0 0.0
        %479 = vmatpush1.msra.mxu0 0.0
        %480 = vmatprep.subr.mxu0 0.0
        %481 = vmatpush1.msra.mxu0 0.0
        %482 = vmatprep.subr.mxu0 0.0
        %483 = vmatpush1.msra.mxu0 0.0
        %484 = vmatprep.subr.mxu0 0.0
        %485 = vmatpush1.msra.mxu0 0.0
        %486 = vmatprep.subr.mxu0 0.0
        %487 = vmatpush1.msra.mxu0 0.0
        %488 = vmatprep.mubr.f32.mxu0 0.0
        %489 = vmatmul.mubr.f32.gmra.mrb[0].mxu0 %v422
        %v490 = vpop.f32.mrb[0].mxu0
        %v491 = vadd.f32 %v419, %v490
        %v492 = vpop.f32.mrb[0].mxu0
        %v493 = vadd.f32 %v419, %v492
        %494 = vdwg.mxu0
        %v495 = vld [vmem:[%s5] sm:$0xff]
        %v496 = vld [vmem:[%s5 + $0x8] sm:$0xff]
        %v497 = vld [vmem:[%s5 + $0x10] sm:$0xff]
        %v498 = vld [vmem:[%s5 + $0x18] sm:$0xff]
        %v499 = vld [vmem:[%s5 + $0x20] sm:$0x1]
        %v500 = vld [vmem:[%s6] sm:$0xff]
        %v501 = vld [vmem:[%s6 + $0x8] sm:$0xff]
        %v502 = vld [vmem:[%s6 + $0x10] sm:$0xff]
        %v503 = vld [vmem:[%s6 + $0x18] sm:$0xff]
        %v504 = vld [vmem:[%s6 + $0x20] sm:$0x1]
        %506 = vset.pattern.permute.xlu0 0
        %507 = vperm.xlu0 %506, %v500
        %v508 = vpop.permute.xlu0 %507
        %511 = vset.pattern.permute.xlu0 0
        %512 = vperm.xlu0 %511, %v501
        %v513 = vpop.permute.xlu0 %512
        %516 = vset.pattern.permute.xlu0 0
        %517 = vperm.xlu0 %516, %v502
        %v518 = vpop.permute.xlu0 %517
        %521 = vset.pattern.permute.xlu0 0
        %522 = vperm.xlu0 %521, %v503
        %v523 = vpop.permute.xlu0 %522
        %526 = vset.pattern.permute.xlu0 0
        %527 = vperm.xlu0 %526, %v504
        %v528 = vpop.permute.xlu0 %527
        %v531 = vsel %vm340, %v495, 0
        %v534 = vsel %vm340, %v496, 0
        %v537 = vsel %vm340, %v497, 0
        %v540 = vsel %vm340, %v498, 0
        %v543 = vsel %vm340, %v499, 0
        %545 = vmatprep.subr.mxu0 %v318
        %546 = vmatpush1.msra.mxu0 %v317
        %547 = vmatprep.subr.mxu0 %v320
        %548 = vmatpush1.msra.mxu0 %v319
        %549 = vmatprep.subr.mxu0 %v322
        %550 = vmatpush1.msra.mxu0 %v321
        %551 = vmatprep.subr.mxu0 %v324
        %552 = vmatpush1.msra.mxu0 %v323
        %553 = vmatprep.subr.mxu0 0.0
        %554 = vmatpush1.msra.mxu0 0.0
        %555 = vmatprep.subr.mxu0 0.0
        %556 = vmatpush1.msra.mxu0 0.0
        %557 = vmatprep.subr.mxu0 0.0
        %558 = vmatpush1.msra.mxu0 0.0
        %559 = vmatprep.subr.mxu0 0.0
        %560 = vmatpush1.msra.mxu0 0.0
        %561 = vmatprep.subr.mxu0 0.0
        %562 = vmatpush1.msra.mxu0 0.0
        %563 = vmatprep.subr.mxu0 0.0
        %564 = vmatpush1.msra.mxu0 0.0
        %565 = vmatprep.subr.mxu0 0.0
        %566 = vmatpush1.msra.mxu0 0.0
        %567 = vmatprep.subr.mxu0 0.0
        %568 = vmatpush1.msra.mxu0 0.0
        %569 = vmatprep.subr.mxu0 0.0
        %570 = vmatpush1.msra.mxu0 0.0
        %571 = vmatprep.subr.mxu0 0.0
        %572 = vmatpush1.msra.mxu0 0.0
        %573 = vmatprep.subr.mxu0 0.0
        %574 = vmatpush1.msra.mxu0 0.0
        %575 = vmatprep.subr.mxu0 0.0
        %576 = vmatpush1.msra.mxu0 0.0
        %577 = vmatprep.subr.mxu0 0.0
        %578 = vmatpush1.msra.mxu0 0.0
        %579 = vmatprep.subr.mxu0 0.0
        %580 = vmatpush1.msra.mxu0 0.0
        %581 = vmatprep.subr.mxu0 0.0
        %582 = vmatpush1.msra.mxu0 0.0
        %583 = vmatprep.subr.mxu0 0.0
        %584 = vmatpush1.msra.mxu0 0.0
        %585 = vmatprep.subr.mxu0 0.0
        %586 = vmatpush1.msra.mxu0 0.0
        %587 = vmatprep.subr.mxu0 0.0
        %588 = vmatpush1.msra.mxu0 0.0
        %589 = vmatprep.subr.mxu0 0.0
        %590 = vmatpush1.msra.mxu0 0.0
        %591 = vmatprep.subr.mxu0 0.0
        %592 = vmatpush1.msra.mxu0 0.0
        %593 = vmatprep.subr.mxu0 0.0
        %594 = vmatpush1.msra.mxu0 0.0
        %595 = vmatprep.subr.mxu0 0.0
        %596 = vmatpush1.msra.mxu0 0.0
        %597 = vmatprep.subr.mxu0 0.0
        %598 = vmatpush1.msra.mxu0 0.0
        %599 = vmatprep.subr.mxu0 0.0
        %600 = vmatpush1.msra.mxu0 0.0
        %601 = vmatprep.subr.mxu0 0.0
        %602 = vmatpush1.msra.mxu0 0.0
        %603 = vmatprep.subr.mxu0 0.0
        %604 = vmatpush1.msra.mxu0 0.0
        %605 = vmatprep.subr.mxu0 0.0
        %606 = vmatpush1.msra.mxu0 0.0
        %607 = vmatprep.subr.mxu0 0.0
        %608 = vmatpush1.msra.mxu0 0.0
        %609 = vmatprep.mubr.f32.mxu0 0.0
        %610 = vmatmul.mubr.f32.gmra.mrb[0].mxu0 %v531
        %v611 = vpop.f32.mrb[0].mxu0
        %v612 = vadd.f32 %v508, %v611
        %v613 = vpop.f32.mrb[0].mxu0
        %v614 = vadd.f32 %v508, %v613
        %615 = vmatprep.mubr.f32.mxu0 0.0
        %616 = vmatmul.mubr.f32.gmra.mrb[0].mxu0 %v534
        %v617 = vpop.f32.mrb[0].mxu0
        %v618 = vadd.f32 %v513, %v617
        %v619 = vpop.f32.mrb[0].mxu0
        %v620 = vadd.f32 %v513, %v619
        %621 = vmatprep.mubr.f32.mxu0 0.0
        %622 = vmatmul.mubr.f32.gmra.mrb[0].mxu0 %v537
        %v623 = vpop.f32.mrb[0].mxu0
        %v624 = vadd.f32 %v518, %v623
        %v625 = vpop.f32.mrb[0].mxu0
        %v626 = vadd.f32 %v518, %v625
        %627 = vmatprep.mubr.f32.mxu0 0.0
        %628 = vmatmul.mubr.f32.gmra.mrb[0].mxu0 %v540
        %v629 = vpop.f32.mrb[0].mxu0
        %v630 = vadd.f32 %v523, %v629
        %v631 = vpop.f32.mrb[0].mxu0
        %v632 = vadd.f32 %v523, %v631
        %633 = vmatprep.mubr.f32.mxu0 0.0
        %634 = vmatmul.mubr.f32.gmra.mrb[0].mxu0 %v543
        %v635 = vpop.f32.mrb[0].mxu0
        %v636 = vadd.f32 %v528, %v635
        %v637 = vpop.f32.mrb[0].mxu0
        %v638 = vadd.f32 %v528, %v637
        %639 = vdwg.mxu0
        %640 = vxpose.xlu0.b32.start [1/16] %v411, 128
        %641 = vxpose.xlu0.b32.cont [2/16] 0.0, 128
        %642 = vxpose.xlu0.b32.cont [3/16] 0.0, 128
        %643 = vxpose.xlu0.b32.cont [4/16] 0.0, 128
        %644 = vxpose.xlu0.b32.cont [5/16] 0.0, 128
        %645 = vxpose.xlu0.b32.cont [6/16] 0.0, 128
        %646 = vxpose.xlu0.b32.cont [7/16] 0.0, 128
        %647 = vxpose.xlu0.b32.cont [8/16] 0.0, 128
        %648 = vxpose.xlu0.b32.cont [9/16] 0.0, 128
        %649 = vxpose.xlu0.b32.cont [10/16] 0.0, 128
        %650 = vxpose.xlu0.b32.cont [11/16] 0.0, 128
        %651 = vxpose.xlu0.b32.cont [12/16] 0.0, 128
        %652 = vxpose.xlu0.b32.cont [13/16] 0.0, 128
        %653 = vxpose.xlu0.b32.cont [14/16] 0.0, 128
        %654 = vxpose.xlu0.b32.cont [15/16] 0.0, 128
        %655 = vxpose.xlu0.b32.end [16/16] 0.0, 128
        %v656 = vpop.trf.xlu0
        %v657 = vpop.trf.xlu0
        %v658 = vpop.trf.xlu0
        %v659 = vpop.trf.xlu0
        %v660 = vpop.trf.xlu0
        %v661 = vpop.trf.xlu0
        %v662 = vpop.trf.xlu0
        %v663 = vpop.trf.xlu0
        %v664 = vpop.trf.xlu0
        %v665 = vpop.trf.xlu0
        %v666 = vpop.trf.xlu0
        %v667 = vpop.trf.xlu0
        %v668 = vpop.trf.xlu0
        %v669 = vpop.trf.xlu0
        %v670 = vpop.trf.xlu0
        %v671 = vpop.trf.xlu0
        %vm672 = vcmask 31744
        %v674 = vsel %vm672, %v656, 0
        %v677 = vsel %vm672, %v657, 0
        %v680 = vsel %vm672, %v658, 0
        %v683 = vsel %vm672, %v659, 0
        %v686 = vsel %vm672, %v660, 0
        %v689 = vsel %vm672, %v661, 0
        %v692 = vsel %vm672, %v662, 0
        %v695 = vsel %vm672, %v663, 0
        %v698 = vsel %vm672, %v664, 0
        %v701 = vsel %vm672, %v665, 0
        %v704 = vsel %vm672, %v666, 0
        %v707 = vsel %vm672, %v667, 0
        %v710 = vsel %vm672, %v668, 0
        %v713 = vsel %vm672, %v669, 0
        %v716 = vsel %vm672, %v670, 0
        %v719 = vsel %vm672, %v671, 0
        %vm721 = vcmask 1043456
        %v723 = vsel %vm721, %v491, 0
        %v726 = vsel %vm721, %v493, 0
        %728 = vmatprep.subr.mxu0 %v726
        %729 = vmatpush1.msra.mxu0 %v723
        %730 = vmatprep.subr.mxu0 0.0
        %731 = vmatpush1.msra.mxu0 0.0
        %732 = vmatprep.subr.mxu0 0.0
        %733 = vmatpush1.msra.mxu0 0.0
        %734 = vmatprep.subr.mxu0 0.0
        %735 = vmatpush1.msra.mxu0 0.0
        %736 = vmatprep.subr.mxu0 0.0
        %737 = vmatpush1.msra.mxu0 0.0
        %738 = vmatprep.subr.mxu0 0.0
        %739 = vmatpush1.msra.mxu0 0.0
        %740 = vmatprep.subr.mxu0 0.0
        %741 = vmatpush1.msra.mxu0 0.0
        %742 = vmatprep.subr.mxu0 0.0
        %743 = vmatpush1.msra.mxu0 0.0
        %744 = vmatprep.subr.mxu0 0.0
        %745 = vmatpush1.msra.mxu0 0.0
        %746 = vmatprep.subr.mxu0 0.0
        %747 = vmatpush1.msra.mxu0 0.0
        %748 = vmatprep.subr.mxu0 0.0
        %749 = vmatpush1.msra.mxu0 0.0
        %750 = vmatprep.subr.mxu0 0.0
        %751 = vmatpush1.msra.mxu0 0.0
        %752 = vmatprep.subr.mxu0 0.0
        %753 = vmatpush1.msra.mxu0 0.0
        %754 = vmatprep.subr.mxu0 0.0
        %755 = vmatpush1.msra.mxu0 0.0
        %756 = vmatprep.subr.mxu0 0.0
        %757 = vmatpush1.msra.mxu0 0.0
        %758 = vmatprep.subr.mxu0 0.0
        %759 = vmatpush1.msra.mxu0 0.0
        %760 = vmatprep.subr.mxu0 0.0
        %761 = vmatpush1.msra.mxu0 0.0
        %762 = vmatprep.subr.mxu0 0.0
        %763 = vmatpush1.msra.mxu0 0.0
        %764 = vmatprep.subr.mxu0 0.0
        %765 = vmatpush1.msra.mxu0 0.0
        %766 = vmatprep.subr.mxu0 0.0
        %767 = vmatpush1.msra.mxu0 0.0
        %768 = vmatprep.subr.mxu0 0.0
        %769 = vmatpush1.msra.mxu0 0.0
        %770 = vmatprep.subr.mxu0 0.0
        %771 = vmatpush1.msra.mxu0 0.0
        %772 = vmatprep.subr.mxu0 0.0
        %773 = vmatpush1.msra.mxu0 0.0
        %774 = vmatprep.subr.mxu0 0.0
        %775 = vmatpush1.msra.mxu0 0.0
        %776 = vmatprep.subr.mxu0 0.0
        %777 = vmatpush1.msra.mxu0 0.0
        %778 = vmatprep.subr.mxu0 0.0
        %779 = vmatpush1.msra.mxu0 0.0
        %780 = vmatprep.subr.mxu0 0.0
        %781 = vmatpush1.msra.mxu0 0.0
        %782 = vmatprep.subr.mxu0 0.0
        %783 = vmatpush1.msra.mxu0 0.0
        %784 = vmatprep.subr.mxu0 0.0
        %785 = vmatpush1.msra.mxu0 0.0
        %786 = vmatprep.subr.mxu0 0.0
        %787 = vmatpush1.msra.mxu0 0.0
        %788 = vmatprep.subr.mxu0 0.0
        %789 = vmatpush1.msra.mxu0 0.0
        %790 = vmatprep.subr.mxu0 0.0
        %791 = vmatpush1.msra.mxu0 0.0
        %792 = vmatprep.mubr.f32.mxu0 0.0
        %793 = vmatmul.mubr.f32.gmra.mrb[0].mxu0 %v674
        %v794 = vpop.f32.mrb[0].mxu0
        %v795 = vadd.f32 0.0, %v794
        %v796 = vpop.f32.mrb[0].mxu0
        %v797 = vadd.f32 0.0, %v796
        %798 = vmatprep.mubr.f32.mxu0 0.0
        %799 = vmatmul.mubr.f32.gmra.mrb[0].mxu0 %v677
        %v800 = vpop.f32.mrb[0].mxu0
        %v801 = vadd.f32 0.0, %v800
        %v802 = vpop.f32.mrb[0].mxu0
        %v803 = vadd.f32 0.0, %v802
        %804 = vmatprep.mubr.f32.mxu0 0.0
        %805 = vmatmul.mubr.f32.gmra.mrb[0].mxu0 %v680
        %v806 = vpop.f32.mrb[0].mxu0
        %v807 = vadd.f32 0.0, %v806
        %v808 = vpop.f32.mrb[0].mxu0
        %v809 = vadd.f32 0.0, %v808
        %810 = vmatprep.mubr.f32.mxu0 0.0
        %811 = vmatmul.mubr.f32.gmra.mrb[0].mxu0 %v683
        %v812 = vpop.f32.mrb[0].mxu0
        %v813 = vadd.f32 0.0, %v812
        %v814 = vpop.f32.mrb[0].mxu0
        %v815 = vadd.f32 0.0, %v814
        %816 = vmatprep.mubr.f32.mxu0 0.0
        %817 = vmatmul.mubr.f32.gmra.mrb[0].mxu0 %v686
        %v818 = vpop.f32.mrb[0].mxu0
        %v819 = vadd.f32 0.0, %v818
        %v820 = vpop.f32.mrb[0].mxu0
        %v821 = vadd.f32 0.0, %v820
        %822 = vmatprep.mubr.f32.mxu0 0.0
        %823 = vmatmul.mubr.f32.gmra.mrb[0].mxu0 %v689
        %v824 = vpop.f32.mrb[0].mxu0
        %v825 = vadd.f32 0.0, %v824
        %v826 = vpop.f32.mrb[0].mxu0
        %v827 = vadd.f32 0.0, %v826
        %828 = vmatprep.mubr.f32.mxu0 0.0
        %829 = vmatmul.mubr.f32.gmra.mrb[0].mxu0 %v692
        %v830 = vpop.f32.mrb[0].mxu0
        %v831 = vadd.f32 0.0, %v830
        %v832 = vpop.f32.mrb[0].mxu0
        %v833 = vadd.f32 0.0, %v832
        %834 = vmatprep.mubr.f32.mxu0 0.0
        %835 = vmatmul.mubr.f32.gmra.mrb[0].mxu0 %v695
        %v836 = vpop.f32.mrb[0].mxu0
        %v837 = vadd.f32 0.0, %v836
        %v838 = vpop.f32.mrb[0].mxu0
        %v839 = vadd.f32 0.0, %v838
        %840 = vmatprep.mubr.f32.mxu0 0.0
        %841 = vmatmul.mubr.f32.gmra.mrb[0].mxu0 %v698
        %v842 = vpop.f32.mrb[0].mxu0
        %v843 = vadd.f32 0.0, %v842
        %v844 = vpop.f32.mrb[0].mxu0
        %v845 = vadd.f32 0.0, %v844
        %846 = vmatprep.mubr.f32.mxu0 0.0
        %847 = vmatmul.mubr.f32.gmra.mrb[0].mxu0 %v701
        %v848 = vpop.f32.mrb[0].mxu0
        %v849 = vadd.f32 0.0, %v848
        %v850 = vpop.f32.mrb[0].mxu0
        %v851 = vadd.f32 0.0, %v850
        %852 = vmatprep.mubr.f32.mxu0 0.0
        %853 = vmatmul.mubr.f32.gmra.mrb[0].mxu0 %v704
        %v854 = vpop.f32.mrb[0].mxu0
        %v855 = vadd.f32 0.0, %v854
        %v856 = vpop.f32.mrb[0].mxu0
        %v857 = vadd.f32 0.0, %v856
        %858 = vmatprep.mubr.f32.mxu0 0.0
        %859 = vmatmul.mubr.f32.gmra.mrb[0].mxu0 %v707
        %v860 = vpop.f32.mrb[0].mxu0
        %v861 = vadd.f32 0.0, %v860
        %v862 = vpop.f32.mrb[0].mxu0
        %v863 = vadd.f32 0.0, %v862
        %864 = vmatprep.mubr.f32.mxu0 0.0
        %865 = vmatmul.mubr.f32.gmra.mrb[0].mxu0 %v710
        %v866 = vpop.f32.mrb[0].mxu0
        %v867 = vadd.f32 0.0, %v866
        %v868 = vpop.f32.mrb[0].mxu0
        %v869 = vadd.f32 0.0, %v868
        %870 = vmatprep.mubr.f32.mxu0 0.0
        %871 = vmatmul.mubr.f32.gmra.mrb[0].mxu0 %v713
        %v872 = vpop.f32.mrb[0].mxu0
        %v873 = vadd.f32 0.0, %v872
        %v874 = vpop.f32.mrb[0].mxu0
        %v875 = vadd.f32 0.0, %v874
        %876 = vmatprep.mubr.f32.mxu0 0.0
        %877 = vmatmul.mubr.f32.gmra.mrb[0].mxu0 %v716
        %v878 = vpop.f32.mrb[0].mxu0
        %v879 = vadd.f32 0.0, %v878
        %v880 = vpop.f32.mrb[0].mxu0
        %v881 = vadd.f32 0.0, %v880
        %882 = vmatprep.mubr.f32.mxu0 0.0
        %883 = vmatmul.mubr.f32.gmra.mrb[0].mxu0 %v719
        %v884 = vpop.f32.mrb[0].mxu0
        %v885 = vadd.f32 0.0, %v884
        %v886 = vpop.f32.mrb[0].mxu0
        %v887 = vadd.f32 0.0, %v886
        %888 = vdwg.mxu0
        %v889 = vlaneseq
        %v890 = vshrl.u32 %v889, 7
        %v891 = vadd.s32 %v890, 8
        %v892 = vadd.s32 %v890, 16
        %v893 = vadd.s32 %v890, 24
        %v894 = vadd.s32 %v890, 32
        %v895 = vadd.s32 %v890, 40
        %v896 = vadd.s32 %v890, 48
        %v897 = vadd.s32 %v890, 56
        %v898 = vadd.s32 %v890, 64
        %v899 = vadd.s32 %v890, 72
        %v900 = vadd.s32 %v890, 80
        %v901 = vadd.s32 %v890, 88
        %v902 = vadd.s32 %v890, 96
        %v903 = vadd.s32 %v890, 104
        %v904 = vadd.s32 %v890, 112
        %v905 = vadd.s32 %v890, 120
        %v906 = vstv %s315
        %v907 = vadd.s32 %v906, %v890
        %v908 = vadd.s32 %v906, %v891
        %v909 = vadd.s32 %v906, %v892
        %v910 = vadd.s32 %v906, %v893
        %v911 = vadd.s32 %v906, %v894
        %v912 = vadd.s32 %v906, %v895
        %v913 = vadd.s32 %v906, %v896
        %v914 = vadd.s32 %v906, %v897
        %v915 = vadd.s32 %v906, %v898
        %v916 = vadd.s32 %v906, %v899
        %v917 = vadd.s32 %v906, %v900
        %v918 = vadd.s32 %v906, %v901
        %v919 = vadd.s32 %v906, %v902
        %v920 = vadd.s32 %v906, %v903
        %v921 = vadd.s32 %v906, %v904
        %v922 = vadd.s32 %v906, %v905
        %v923 = vlaneseq
        %v924 = vand.u32 %v923, 127
        %v925 = vadd.s32 %v924, 128
        %v926 = vshra.s32 %v907, 4
        %v927 = vshra.s32 %v908, 4
        %v928 = vshra.s32 %v909, 4
        %v929 = vshra.s32 %v910, 4
        %v930 = vshra.s32 %v911, 4
        %v931 = vshra.s32 %v912, 4
        %v932 = vshra.s32 %v913, 4
        %v933 = vshra.s32 %v914, 4
        %v934 = vshra.s32 %v915, 4
        %v935 = vshra.s32 %v916, 4
        %v936 = vshra.s32 %v917, 4
        %v937 = vshra.s32 %v918, 4
        %v938 = vshra.s32 %v919, 4
        %v939 = vshra.s32 %v920, 4
        %v940 = vshra.s32 %v921, 4
        %v941 = vshra.s32 %v922, 4
        %v942 = vand.u32 %v907, 15
        %v943 = vand.u32 %v908, 15
        %v944 = vand.u32 %v909, 15
        %v945 = vand.u32 %v910, 15
        %v946 = vand.u32 %v911, 15
        %v947 = vand.u32 %v912, 15
        %v948 = vand.u32 %v913, 15
        %v949 = vand.u32 %v914, 15
        %v950 = vand.u32 %v915, 15
        %v951 = vand.u32 %v916, 15
        %v952 = vand.u32 %v917, 15
        %v953 = vand.u32 %v918, 15
        %v954 = vand.u32 %v919, 15
        %v955 = vand.u32 %v920, 15
        %v956 = vand.u32 %v921, 15
        %v957 = vand.u32 %v922, 15
        %v958 = vshra.s32 %v924, 4
        %v959 = vshra.s32 %v925, 4
        %v960 = vand.u32 %v924, 15
        %v961 = vand.u32 %v925, 15
        %vm962 = vcmp.eq.s32.totalorder %v926, %v958
        %vm963 = vcmp.eq.s32.totalorder %v926, %v959
        %vm964 = vcmp.eq.s32.totalorder %v927, %v958
        %vm965 = vcmp.eq.s32.totalorder %v927, %v959
        %vm966 = vcmp.eq.s32.totalorder %v928, %v958
        %vm967 = vcmp.eq.s32.totalorder %v928, %v959
        %vm968 = vcmp.eq.s32.totalorder %v929, %v958
        %vm969 = vcmp.eq.s32.totalorder %v929, %v959
        %vm970 = vcmp.eq.s32.totalorder %v930, %v958
        %vm971 = vcmp.eq.s32.totalorder %v930, %v959
        %vm972 = vcmp.eq.s32.totalorder %v931, %v958
        %vm973 = vcmp.eq.s32.totalorder %v931, %v959
        %vm974 = vcmp.eq.s32.totalorder %v932, %v958
        %vm975 = vcmp.eq.s32.totalorder %v932, %v959
        %vm976 = vcmp.eq.s32.totalorder %v933, %v958
        %vm977 = vcmp.eq.s32.totalorder %v933, %v959
        %vm978 = vcmp.eq.s32.totalorder %v934, %v958
        %vm979 = vcmp.eq.s32.totalorder %v934, %v959
        %vm980 = vcmp.eq.s32.totalorder %v935, %v958
        %vm981 = vcmp.eq.s32.totalorder %v935, %v959
        %vm982 = vcmp.eq.s32.totalorder %v936, %v958
        %vm983 = vcmp.eq.s32.totalorder %v936, %v959
        %vm984 = vcmp.eq.s32.totalorder %v937, %v958
        %vm985 = vcmp.eq.s32.totalorder %v937, %v959
        %vm986 = vcmp.eq.s32.totalorder %v938, %v958
        %vm987 = vcmp.eq.s32.totalorder %v938, %v959
        %vm988 = vcmp.eq.s32.totalorder %v939, %v958
        %vm989 = vcmp.eq.s32.totalorder %v939, %v959
        %vm990 = vcmp.eq.s32.totalorder %v940, %v958
        %vm991 = vcmp.eq.s32.totalorder %v940, %v959
        %vm992 = vcmp.eq.s32.totalorder %v941, %v958
        %vm993 = vcmp.eq.s32.totalorder %v941, %v959
        %vm994 = vcmp.eq.s32.totalorder %v942, %v960
        %vm995 = vcmp.eq.s32.totalorder %v942, %v961
        %vm996 = vcmp.eq.s32.totalorder %v943, %v960
        %vm997 = vcmp.eq.s32.totalorder %v943, %v961
        %vm998 = vcmp.eq.s32.totalorder %v944, %v960
        %vm999 = vcmp.eq.s32.totalorder %v944, %v961
        %vm1000 = vcmp.eq.s32.totalorder %v945, %v960
        %vm1001 = vcmp.eq.s32.totalorder %v945, %v961
        %vm1002 = vcmp.eq.s32.totalorder %v946, %v960
        %vm1003 = vcmp.eq.s32.totalorder %v946, %v961
        %vm1004 = vcmp.eq.s32.totalorder %v947, %v960
        %vm1005 = vcmp.eq.s32.totalorder %v947, %v961
        %vm1006 = vcmp.eq.s32.totalorder %v948, %v960
        %vm1007 = vcmp.eq.s32.totalorder %v948, %v961
        %vm1008 = vcmp.eq.s32.totalorder %v949, %v960
        %vm1009 = vcmp.eq.s32.totalorder %v949, %v961
        %vm1010 = vcmp.eq.s32.totalorder %v950, %v960
        %vm1011 = vcmp.eq.s32.totalorder %v950, %v961
        %vm1012 = vcmp.eq.s32.totalorder %v951, %v960
        %vm1013 = vcmp.eq.s32.totalorder %v951, %v961
        %vm1014 = vcmp.eq.s32.totalorder %v952, %v960
        %vm1015 = vcmp.eq.s32.totalorder %v952, %v961
        %vm1016 = vcmp.eq.s32.totalorder %v953, %v960
        %vm1017 = vcmp.eq.s32.totalorder %v953, %v961
        %vm1018 = vcmp.eq.s32.totalorder %v954, %v960
        %vm1019 = vcmp.eq.s32.totalorder %v954, %v961
        %vm1020 = vcmp.eq.s32.totalorder %v955, %v960
        %vm1021 = vcmp.eq.s32.totalorder %v955, %v961
        %vm1022 = vcmp.eq.s32.totalorder %v956, %v960
        %vm1023 = vcmp.eq.s32.totalorder %v956, %v961
        %vm1024 = vcmp.eq.s32.totalorder %v957, %v960
        %vm1025 = vcmp.eq.s32.totalorder %v957, %v961
        %vm1026 = vmor %vm962, %vm994
        %vm1027 = vmor %vm963, %vm995
        %vm1028 = vmor %vm964, %vm996
        %vm1029 = vmor %vm965, %vm997
        %vm1030 = vmor %vm966, %vm998
        %vm1031 = vmor %vm967, %vm999
        %vm1032 = vmor %vm968, %vm1000
        %vm1033 = vmor %vm969, %vm1001
        %vm1034 = vmor %vm970, %vm1002
        %vm1035 = vmor %vm971, %vm1003
        %vm1036 = vmor %vm972, %vm1004
        %vm1037 = vmor %vm973, %vm1005
        %vm1038 = vmor %vm974, %vm1006
        %vm1039 = vmor %vm975, %vm1007
        %vm1040 = vmor %vm976, %vm1008
        %vm1041 = vmor %vm977, %vm1009
        %vm1042 = vmor %vm978, %vm1010
        %vm1043 = vmor %vm979, %vm1011
        %vm1044 = vmor %vm980, %vm1012
        %vm1045 = vmor %vm981, %vm1013
        %vm1046 = vmor %vm982, %vm1014
        %vm1047 = vmor %vm983, %vm1015
        %vm1048 = vmor %vm984, %vm1016
        %vm1049 = vmor %vm985, %vm1017
        %vm1050 = vmor %vm986, %vm1018
        %vm1051 = vmor %vm987, %vm1019
        %vm1052 = vmor %vm988, %vm1020
        %vm1053 = vmor %vm989, %vm1021
        %vm1054 = vmor %vm990, %vm1022
        %vm1055 = vmor %vm991, %vm1023
        %vm1056 = vmor %vm992, %vm1024
        %vm1057 = vmor %vm993, %vm1025
        %v1058 = vsel %vm1026, %v795, -inf
        %v1059 = vsel %vm1027, %v797, -inf
        %v1060 = vsel %vm1028, %v801, -inf
        %v1061 = vsel %vm1029, %v803, -inf
        %v1062 = vsel %vm1030, %v807, -inf
        %v1063 = vsel %vm1031, %v809, -inf
        %v1064 = vsel %vm1032, %v813, -inf
        %v1065 = vsel %vm1033, %v815, -inf
        %v1066 = vsel %vm1034, %v819, -inf
        %v1067 = vsel %vm1035, %v821, -inf
        %v1068 = vsel %vm1036, %v825, -inf
        %v1069 = vsel %vm1037, %v827, -inf
        %v1070 = vsel %vm1038, %v831, -inf
        %v1071 = vsel %vm1039, %v833, -inf
        %v1072 = vsel %vm1040, %v837, -inf
        %v1073 = vsel %vm1041, %v839, -inf
        %v1074 = vsel %vm1042, %v843, -inf
        %v1075 = vsel %vm1043, %v845, -inf
        %v1076 = vsel %vm1044, %v849, -inf
        %v1077 = vsel %vm1045, %v851, -inf
        %v1078 = vsel %vm1046, %v855, -inf
        %v1079 = vsel %vm1047, %v857, -inf
        %v1080 = vsel %vm1048, %v861, -inf
        %v1081 = vsel %vm1049, %v863, -inf
        %v1082 = vsel %vm1050, %v867, -inf
        %v1083 = vsel %vm1051, %v869, -inf
        %v1084 = vsel %vm1052, %v873, -inf
        %v1085 = vsel %vm1053, %v875, -inf
        %v1086 = vsel %vm1054, %v879, -inf
        %v1087 = vsel %vm1055, %v881, -inf
        %v1088 = vsel %vm1056, %v885, -inf
        %v1089 = vsel %vm1057, %v887, -inf
        %v1090 = vmax.f32 %v1058, %v1059
        %1091 = vmax.xlane.f32.xlu0 %v1090
        %v1092 = vpop.xlane.xlu0 %1091
        %v1093 = vmax.f32 %v1060, %v1061
        %1094 = vmax.xlane.f32.xlu0 %v1093
        %v1095 = vpop.xlane.xlu0 %1094
        %v1096 = vmax.f32 %v1062, %v1063
        %1097 = vmax.xlane.f32.xlu0 %v1096
        %v1098 = vpop.xlane.xlu0 %1097
        %v1099 = vmax.f32 %v1064, %v1065
        %1100 = vmax.xlane.f32.xlu0 %v1099
        %v1101 = vpop.xlane.xlu0 %1100
        %v1102 = vmax.f32 %v1066, %v1067
        %1103 = vmax.xlane.f32.xlu0 %v1102
        %v1104 = vpop.xlane.xlu0 %1103
        %v1105 = vmax.f32 %v1068, %v1069
        %1106 = vmax.xlane.f32.xlu0 %v1105
        %v1107 = vpop.xlane.xlu0 %1106
        %v1108 = vmax.f32 %v1070, %v1071
        %1109 = vmax.xlane.f32.xlu0 %v1108
        %v1110 = vpop.xlane.xlu0 %1109
        %v1111 = vmax.f32 %v1072, %v1073
        %1112 = vmax.xlane.f32.xlu0 %v1111
        %v1113 = vpop.xlane.xlu0 %1112
        %v1114 = vmax.f32 %v1074, %v1075
        %1115 = vmax.xlane.f32.xlu0 %v1114
        %v1116 = vpop.xlane.xlu0 %1115
        %v1117 = vmax.f32 %v1076, %v1077
        %1118 = vmax.xlane.f32.xlu0 %v1117
        %v1119 = vpop.xlane.xlu0 %1118
        %v1120 = vmax.f32 %v1078, %v1079
        %1121 = vmax.xlane.f32.xlu0 %v1120
        %v1122 = vpop.xlane.xlu0 %1121
        %v1123 = vmax.f32 %v1080, %v1081
        %1124 = vmax.xlane.f32.xlu0 %v1123
        %v1125 = vpop.xlane.xlu0 %1124
        %v1126 = vmax.f32 %v1082, %v1083
        %1127 = vmax.xlane.f32.xlu0 %v1126
        %v1128 = vpop.xlane.xlu0 %1127
        %v1129 = vmax.f32 %v1084, %v1085
        %1130 = vmax.xlane.f32.xlu0 %v1129
        %v1131 = vpop.xlane.xlu0 %1130
        %v1132 = vmax.f32 %v1086, %v1087
        %1133 = vmax.xlane.f32.xlu0 %v1132
        %v1134 = vpop.xlane.xlu0 %1133
        %v1135 = vmax.f32 %v1088, %v1089
        %1136 = vmax.xlane.f32.xlu0 %v1135
        %v1137 = vpop.xlane.xlu0 %1136
        %v1138 = vsub.f32 %v1058, %v1092
        %v1139 = vsub.f32 %v1059, %v1092
        %v1140 = vsub.f32 %v1060, %v1095
        %v1141 = vsub.f32 %v1061, %v1095
        %v1142 = vsub.f32 %v1062, %v1098
        %v1143 = vsub.f32 %v1063, %v1098
        %v1144 = vsub.f32 %v1064, %v1101
        %v1145 = vsub.f32 %v1065, %v1101
        %v1146 = vsub.f32 %v1066, %v1104
        %v1147 = vsub.f32 %v1067, %v1104
        %v1148 = vsub.f32 %v1068, %v1107
        %v1149 = vsub.f32 %v1069, %v1107
        %v1150 = vsub.f32 %v1070, %v1110
        %v1151 = vsub.f32 %v1071, %v1110
        %v1152 = vsub.f32 %v1072, %v1113
        %v1153 = vsub.f32 %v1073, %v1113
        %v1154 = vsub.f32 %v1074, %v1116
        %v1155 = vsub.f32 %v1075, %v1116
        %v1156 = vsub.f32 %v1076, %v1119
        %v1157 = vsub.f32 %v1077, %v1119
        %v1158 = vsub.f32 %v1078, %v1122
        %v1159 = vsub.f32 %v1079, %v1122
        %v1160 = vsub.f32 %v1080, %v1125
        %v1161 = vsub.f32 %v1081, %v1125
        %v1162 = vsub.f32 %v1082, %v1128
        %v1163 = vsub.f32 %v1083, %v1128
        %v1164 = vsub.f32 %v1084, %v1131
        %v1165 = vsub.f32 %v1085, %v1131
        %v1166 = vsub.f32 %v1086, %v1134
        %v1167 = vsub.f32 %v1087, %v1134
        %v1168 = vsub.f32 %v1088, %v1137
        %v1169 = vsub.f32 %v1089, %v1137
        %v1170 = vmul.f32 %v1138, 1.442695
        %v1171 = vpow.pop %v1170
        %v1172 = vmul.f32 %v1139, 1.442695
        %v1173 = vpow.pop %v1172
        %v1174 = vmul.f32 %v1140, 1.442695
        %v1175 = vpow.pop %v1174
        %v1176 = vmul.f32 %v1141, 1.442695
        %v1177 = vpow.pop %v1176
        %v1178 = vmul.f32 %v1142, 1.442695
        %v1179 = vpow.pop %v1178
        %v1180 = vmul.f32 %v1143, 1.442695
        %v1181 = vpow.pop %v1180
        %v1182 = vmul.f32 %v1144, 1.442695
        %v1183 = vpow.pop %v1182
        %v1184 = vmul.f32 %v1145, 1.442695
        %v1185 = vpow.pop %v1184
        %v1186 = vmul.f32 %v1146, 1.442695
        %v1187 = vpow.pop %v1186
        %v1188 = vmul.f32 %v1147, 1.442695
        %v1189 = vpow.pop %v1188
        %v1190 = vmul.f32 %v1148, 1.442695
        %v1191 = vpow.pop %v1190
        %v1192 = vmul.f32 %v1149, 1.442695
        %v1193 = vpow.pop %v1192
        %v1194 = vmul.f32 %v1150, 1.442695
        %v1195 = vpow.pop %v1194
        %v1196 = vmul.f32 %v1151, 1.442695
        %v1197 = vpow.pop %v1196
        %v1198 = vmul.f32 %v1152, 1.442695
        %v1199 = vpow.pop %v1198
        %v1200 = vmul.f32 %v1153, 1.442695
        %v1201 = vpow.pop %v1200
        %v1202 = vmul.f32 %v1154, 1.442695
        %v1203 = vpow.pop %v1202
        %v1204 = vmul.f32 %v1155, 1.442695
        %v1205 = vpow.pop %v1204
        %v1206 = vmul.f32 %v1156, 1.442695
        %v1207 = vpow.pop %v1206
        %v1208 = vmul.f32 %v1157, 1.442695
        %v1209 = vpow.pop %v1208
        %v1210 = vmul.f32 %v1158, 1.442695
        %v1211 = vpow.pop %v1210
        %v1212 = vmul.f32 %v1159, 1.442695
        %v1213 = vpow.pop %v1212
        %v1214 = vmul.f32 %v1160, 1.442695
        %v1215 = vpow.pop %v1214
        %v1216 = vmul.f32 %v1161, 1.442695
        %v1217 = vpow.pop %v1216
        %v1218 = vmul.f32 %v1162, 1.442695
        %v1219 = vpow.pop %v1218
        %v1220 = vmul.f32 %v1163, 1.442695
        %v1221 = vpow.pop %v1220
        %v1222 = vmul.f32 %v1164, 1.442695
        %v1223 = vpow.pop %v1222
        %v1224 = vmul.f32 %v1165, 1.442695
        %v1225 = vpow.pop %v1224
        %v1226 = vmul.f32 %v1166, 1.442695
        %v1227 = vpow.pop %v1226
        %v1228 = vmul.f32 %v1167, 1.442695
        %v1229 = vpow.pop %v1228
        %v1230 = vmul.f32 %v1168, 1.442695
        %v1231 = vpow.pop %v1230
        %v1232 = vmul.f32 %v1169, 1.442695
        %v1233 = vpow.pop %v1232
        %1234 = vmatprep.subr.mxu0 %v1173
        %1235 = vmatpush1.xpose.msra.mxu0 %v1171
        %1236 = vmatprep.subr.mxu0 %v1177
        %1237 = vmatpush1.xpose.msra.mxu0 %v1175
        %1238 = vmatprep.subr.mxu0 %v1181
        %1239 = vmatpush1.xpose.msra.mxu0 %v1179
        %1240 = vmatprep.subr.mxu0 %v1185
        %1241 = vmatpush1.xpose.msra.mxu0 %v1183
        %1242 = vmatprep.subr.mxu0 %v1189
        %1243 = vmatpush1.xpose.msra.mxu0 %v1187
        %1244 = vmatprep.subr.mxu0 %v1193
        %1245 = vmatpush1.xpose.msra.mxu0 %v1191
        %1246 = vmatprep.subr.mxu0 %v1197
        %1247 = vmatpush1.xpose.msra.mxu0 %v1195
        %1248 = vmatprep.subr.mxu0 %v1201
        %1249 = vmatpush1.xpose.msra.mxu0 %v1199
        %1250 = vmatprep.subr.mxu0 %v1205
        %1251 = vmatpush1.xpose.msra.mxu0 %v1203
        %1252 = vmatprep.subr.mxu0 %v1209
        %1253 = vmatpush1.xpose.msra.mxu0 %v1207
        %1254 = vmatprep.subr.mxu0 %v1213
        %1255 = vmatpush1.xpose.msra.mxu0 %v1211
        %1256 = vmatprep.subr.mxu0 %v1217
        %1257 = vmatpush1.xpose.msra.mxu0 %v1215
        %1258 = vmatprep.subr.mxu0 %v1221
        %1259 = vmatpush1.xpose.msra.mxu0 %v1219
        %1260 = vmatprep.subr.mxu0 %v1225
        %1261 = vmatpush1.xpose.msra.mxu0 %v1223
        %1262 = vmatprep.subr.mxu0 %v1229
        %1263 = vmatpush1.xpose.msra.mxu0 %v1227
        %1264 = vmatprep.subr.mxu0 %v1233
        %1265 = vmatpush1.xpose.msra.mxu0 %v1231
        %1266 = vmatprep.subr.mxu0 0.0
        %1267 = vmatpush1.xpose.msra.mxu0 0.0
        %1268 = vmatprep.subr.mxu0 0.0
        %1269 = vmatpush1.xpose.msra.mxu0 0.0
        %1270 = vmatprep.subr.mxu0 0.0
        %1271 = vmatpush1.xpose.msra.mxu0 0.0
        %1272 = vmatprep.subr.mxu0 0.0
        %1273 = vmatpush1.xpose.msra.mxu0 0.0
        %1274 = vmatprep.subr.mxu0 0.0
        %1275 = vmatpush1.xpose.msra.mxu0 0.0
        %1276 = vmatprep.subr.mxu0 0.0
        %1277 = vmatpush1.xpose.msra.mxu0 0.0
        %1278 = vmatprep.subr.mxu0 0.0
        %1279 = vmatpush1.xpose.msra.mxu0 0.0
        %1280 = vmatprep.subr.mxu0 0.0
        %1281 = vmatpush1.xpose.msra.mxu0 0.0
        %1282 = vmatprep.subr.mxu0 0.0
        %1283 = vmatpush1.xpose.msra.mxu0 0.0
        %1284 = vmatprep.subr.mxu0 0.0
        %1285 = vmatpush1.xpose.msra.mxu0 0.0
        %1286 = vmatprep.subr.mxu0 0.0
        %1287 = vmatpush1.xpose.msra.mxu0 0.0
        %1288 = vmatprep.subr.mxu0 0.0
        %1289 = vmatpush1.xpose.msra.mxu0 0.0
        %1290 = vmatprep.subr.mxu0 0.0
        %1291 = vmatpush1.xpose.msra.mxu0 0.0
        %1292 = vmatprep.subr.mxu0 0.0
        %1293 = vmatpush1.xpose.msra.mxu0 0.0
        %1294 = vmatprep.subr.mxu0 0.0
        %1295 = vmatpush1.xpose.msra.mxu0 0.0
        %1296 = vmatprep.subr.mxu0 0.0
        %1297 = vmatpush1.xpose.msra.mxu0 0.0
        %1298 = vmatprep.mubr.f32.mxu0 %v614
        %1299 = vmatmul.mubr.f32.gmra.mrb[0].mxu0 %v612
        %v1300 = vpop.f32.mrb[0].mxu0
        %v1301 = vadd.f32 0.0, %v1300
        %v1302 = vpop.f32.mrb[0].mxu0
        %1303 = vmatprep.mubr.f32.mxu0 %v620
        %1304 = vmatmul.mubr.f32.gmra.mrb[0].mxu0 %v618
        %v1305 = vpop.f32.mrb[0].mxu0
        %v1306 = vadd.f32 0.0, %v1305
        %v1307 = vpop.f32.mrb[0].mxu0
        %1308 = vmatprep.mubr.f32.mxu0 %v626
        %1309 = vmatmul.mubr.f32.gmra.mrb[0].mxu0 %v624
        %v1310 = vpop.f32.mrb[0].mxu0
        %v1311 = vadd.f32 0.0, %v1310
        %v1312 = vpop.f32.mrb[0].mxu0
        %1313 = vmatprep.mubr.f32.mxu0 %v632
        %1314 = vmatmul.mubr.f32.gmra.mrb[0].mxu0 %v630
        %v1315 = vpop.f32.mrb[0].mxu0
        %v1316 = vadd.f32 0.0, %v1315
        %v1317 = vpop.f32.mrb[0].mxu0
        %1318 = vmatprep.mubr.f32.mxu0 %v638
        %1319 = vmatmul.mubr.f32.gmra.mrb[0].mxu0 %v636
        %v1320 = vpop.f32.mrb[0].mxu0
        %v1321 = vadd.f32 0.0, %v1320
        %v1322 = vpop.f32.mrb[0].mxu0
        %1323 = vdwg.mxu0
        %v1324 = vrcp.pop %v1321
        %v1325 = vlaneseq
        %v1326 = vshrl.u32 %v1325, 7
        %v1327 = vsub.s32 0, %v1326
        %v1328 = vrot.slane %v1324, %v1327
        %v1329 = vmul.f32 %v1301, %v1328
        %v1330 = vmul.f32 %v1306, %v1328
        %v1331 = vmul.f32 %v1311, %v1328
        %v1332 = vmul.f32 %v1316, %v1328
        %v1333 = vstv %s316
        %v1334 = vmul.f32 %v1333, %v1329
        %v1335 = vmul.f32 %v1333, %v1330
        %v1336 = vmul.f32 %v1333, %v1331
        %v1337 = vmul.f32 %v1333, %v1332
        %v1338 = vadd.f32 %v1334, %v329
        %v1339 = vadd.f32 %v1335, %v330
        %v1340 = vadd.f32 %v1336, %v331
        %v1341 = vadd.f32 %v1337, %v332
        %1342 = vst [vmem:[%s309] sm:$0xff] %v1338
        %1343 = vst [vmem:[%s309 + $0x8] sm:$0xff] %v1339
        %1344 = vst [vmem:[%s309 + $0x10] sm:$0xff] %v1340
        %1345 = vst [vmem:[%s309 + $0x18] sm:$0xff] %v1341
        %s1346 = sand.u32 %s215, 1
        %s1347 = sand.u32 %s215, 1
        %s1348 = smul.addr %s1347, 32
        %s1349 = scalar_lea.vmem [#allocation3], %s1348
        // Predicated region
        $region53: #{criss_cross_attention.1} parent=51 // pred_check
          %p1350 = pneg %p225
        $region54: #{criss_cross_attention.1} parent=51 // pred_check_branch
          %1352 = sbr.rel (%p1350) target = $region56
        $region55: #{criss_cross_attention.1} parent=51 // pred_region
          %s1353 = smul.addr %s24, 8
          %s1354 = sadd.s32 %s25, %s1353
          %s1355 = smul.addr %s1354, 8
          %s1356 = scalar_lea.vmem %s8, %s1355
          // Predicated region
          $region57: #{criss_cross_attention.1} parent=55 // pred_check
            _
          $region58: #{criss_cross_attention.1} parent=55 // pred_check_branch
            %1358 = sbr.rel (0) target = $region60
          $region59: #{criss_cross_attention.1} parent=55 // pred_region
            // Predicated region
            $region61: #{criss_cross_attention.1} parent=59 // pred_check
              _
            $region62: #{criss_cross_attention.1} parent=59 // pred_check_branch
              %1360 = sbr.rel (0) target = $region64
            $region63: #{criss_cross_attention.1} parent=59 // pred_region
              // Predicated region
              $region76: #{criss_cross_attention.1} parent=63 // pred_check
                _
              $region77: #{criss_cross_attention.1} parent=63 // pred_check_branch
                %1381 = sbr.rel (0) target = $region79
              $region78: #{criss_cross_attention.1} parent=63 // pred_region
                loop: start=0, step=1, limit=1
                $region80: #{criss_cross_attention.1} parent=78 // loop_pre_header
                  _
                $region81: #{criss_cross_attention.1} parent=78 // loop_header
                  %s1383 = sphi 0, %s1387
                  %p1384 = scmp.ge.s32.totalorder %s1383, 1
                  %s1388 = sphi %s1349, %s1349
                  %s1389 = sphi %s1356, %s1356
                $region82: #{criss_cross_attention.1} parent=78 // loop_header_branch
                  %1386 = sbr.rel (%p1384) target = $region86
                $region83: #{criss_cross_attention.1} parent=78 // loop_body
                  %v1390 = vld [vmem:[%s1388] sm:$0xff]
                  %1391 = vst [vmem:[%s1389] sm:$0xff] %v1390
                  %v1392 = vld [vmem:[%s1388 + $0x8] sm:$0xff]
                  %1393 = vst [vmem:[%s1389 + $0x10] sm:$0xff] %v1392
                  %v1394 = vld [vmem:[%s1388 + $0x10] sm:$0xff]
                  %1395 = vst [vmem:[%s1389 + $0x20] sm:$0xff] %v1394
                  %v1396 = vld [vmem:[%s1388 + $0x18] sm:$0xff]
                  %1397 = vst [vmem:[%s1389 + $0x30] sm:$0xff] %v1396
                $region84: #{criss_cross_attention.1} parent=78 // loop_footer
                  %s1387 = sadd.s32 1, %s1383
                $region85: #{criss_cross_attention.1} parent=78 // loop_footer_branch
                  %1382 = sbr.rel target = $region81
                $region86: #{criss_cross_attention.1} parent=78 // loop_exit
                  _
              $region79: #{criss_cross_attention.1} parent=63 // pred_fallthru
                _
              // Predicated region
              $region87: #{criss_cross_attention.1} parent=63 // pred_check
                _
              $region88: #{criss_cross_attention.1} parent=63 // pred_check_branch
                %1399 = sbr.rel target = $region90
              $region89: #{criss_cross_attention.1} parent=63 // pred_region
                _
              $region90: #{criss_cross_attention.1} parent=63 // pred_fallthru
                _
            $region64: #{criss_cross_attention.1} parent=59 // pred_fallthru
              _
            // Predicated region
            $region65: #{criss_cross_attention.1} parent=59 // pred_check
              _
            $region66: #{criss_cross_attention.1} parent=59 // pred_check_branch
              %1362 = sbr.rel target = $region68
            $region67: #{criss_cross_attention.1} parent=59 // pred_region
              loop: start=0, step=1, limit=1
              $region69: #{criss_cross_attention.1} parent=67 // loop_pre_header
                _
              $region70: #{criss_cross_attention.1} parent=67 // loop_header
                %s1365 = sphi 0, %s1369
                %p1366 = scmp.ge.s32.totalorder %s1365, 1
                %s1370 = sphi %s1349, %s1349
                %s1371 = sphi %s1356, %s1356
              $region71: #{criss_cross_attention.1} parent=67 // loop_header_branch
                %1368 = sbr.rel (%p1366) target = $region75
              $region72: #{criss_cross_attention.1} parent=67 // loop_body
                %v1372 = vld [vmem:[%s1370] sm:$0xff]
                %1373 = vst [vmem:[%s1371] sm:$0xff] %v1372
                %v1374 = vld [vmem:[%s1370 + $0x8] sm:$0xff]
                %1375 = vst [vmem:[%s1371 + $0x10] sm:$0xff] %v1374
                %v1376 = vld [vmem:[%s1370 + $0x10] sm:$0xff]
                %1377 = vst [vmem:[%s1371 + $0x20] sm:$0xff] %v1376
                %v1378 = vld [vmem:[%s1370 + $0x18] sm:$0xff]
                %1379 = vst [vmem:[%s1371 + $0x30] sm:$0xff] %v1378
              $region73: #{criss_cross_attention.1} parent=67 // loop_footer
                %s1369 = sadd.s32 1, %s1365
              $region74: #{criss_cross_attention.1} parent=67 // loop_footer_branch
                %1364 = sbr.rel target = $region70
              $region75: #{criss_cross_attention.1} parent=67 // loop_exit
                _
            $region68: #{criss_cross_attention.1} parent=59 // pred_fallthru
              _
          $region60: #{criss_cross_attention.1} parent=55 // pred_fallthru
            _
          %1400 = vnop
        $region56: #{criss_cross_attention.1} parent=51 // pred_fallthru
          _
      $region52: #{criss_cross_attention.1} parent=5 // pred_fallthru
        _
      %p1401 = scmp.le.s32.totalorder 2, %s15
      // Predicated region
      $region91: #{criss_cross_attention.1} parent=5 // pred_check
        %p1402 = pneg %p1401
      $region92: #{criss_cross_attention.1} parent=5 // pred_check_branch
        %1404 = sbr.rel (%p1402) target = $region94
      $region93: #{criss_cross_attention.1} parent=5 // pred_region
        %s1405 = ssub.s32 %s15, 2
        // Predicated region
        $region95: #{criss_cross_attention.1} parent=93 // pred_check
          %p1406 = pneg %p231
        $region96: #{criss_cross_attention.1} parent=93 // pred_check_branch
          %1408 = sbr.rel (%p1406) target = $region98
        $region97: #{criss_cross_attention.1} parent=93 // pred_region
          %s1409 = sand.u32 %s216, 1
          %s1410 = sand.u32 %s216, 1
          %s1411 = smul.addr %s1410, 32
          %s1412 = scalar_lea.vmem [#allocation3], %s1411
        $region98: #{criss_cross_attention.1} parent=93 // pred_fallthru
          _
      $region94: #{criss_cross_attention.1} parent=5 // pred_fallthru
        _
    $region6: #{criss_cross_attention.1} parent=1 // loop_footer
      %s19 = sadd.s32 1, %s15
    $region7: #{criss_cross_attention.1} parent=1 // loop_footer_branch
      %14 = sbr.rel target = $region3
    $region8: #{criss_cross_attention.1} parent=1 // loop_exit
      _

</llo_original>
